<compile_context>
chip_gen: v7x
topology: tpu7x:2x2x1
jax: 0.10.0
libtpu: 0.0.40
codegen_flags: <defaults>
</compile_context>

<pallas_src>
import functools

import jax
import jax.numpy as jnp
from jax.experimental import pallas as pl
from jax.experimental.pallas import tpu as pltpu

CACHE_T = 2

_VMEM_LIMIT_BYTES = 40 * 1024 * 1024   # safe on v7x (64 MiB) and v5e/v6e (128 MiB)
_TILE_VMEM_BUDGET = 18 * 1024 * 1024   # target per-grid-step working set


def _round_up(x, m):
    return (x + m - 1) // m * m


# ----------------------------------------------------------------------------
# Pallas kernel: Kh x Kw unit-stride VALID conv over an NHWC row tile.
#   xm_ref : (1, tile_rows,         Wp, Cin)  main rows of padded image (bf16)
#   xh_ref : (1, kh_taps - 1,       Wp, Cin)  halo rows just below tile (bf16)
#   w_ref  : (kh_taps, kw_taps*Cin, Cout)     fused weights (bf16)
#   b_ref  : (1, Cout)                        bias (f32)
#   o_ref  : (1, tile_rows, W_out,  Cout)     output (f32)
# One fused MXU matmul per row-tap: contraction dim = kw_taps * Cin.
# ----------------------------------------------------------------------------
def _conv_taps_kernel(xm_ref, xh_ref, w_ref, b_ref, o_ref, *, kh_taps, kw_taps):
    tile_rows = o_ref.shape[1]
    w_out = o_ref.shape[2]
    cout = o_ref.shape[3]
    cin = xm_ref.shape[3]

    # (tile_rows + kh_taps - 1, Wp, Cin) window, VMEM resident (no extra HBM DMA).
    xwin = jnp.concatenate([xm_ref[0], xh_ref[0]], axis=0)

    acc = jnp.zeros((tile_rows * w_out, cout), jnp.float32)
    for kh in range(kh_taps):                       # static unroll (2 or 3 taps)
        rows = xwin[kh:kh + tile_rows]              # (tile_rows, Wp, Cin)
        cols = [rows[:, kw:kw + w_out, :] for kw in range(kw_taps)]
        a = jnp.concatenate(cols, axis=-1)          # (tile_rows, W_out, kw_taps*Cin)
        a = a.reshape(tile_rows * w_out, kw_taps * cin)
        acc = acc + jnp.dot(a, w_ref[kh], preferred_element_type=jnp.float32)

    out = acc + b_ref[...]                          # f32 bias add
    o_ref[0] = out.reshape(tile_rows, w_out, cout).astype(o_ref.dtype)


def _pick_tile_rows(h_rows, wp, w_out, cin, cout, kh_taps, kw_taps):
    """Largest row tile whose per-step working set fits the VMEM budget."""
    per_row = (2 * wp * cin * 2                   # double-buffered bf16 input rows
               + wp * cin * 2                     # in-kernel window copy
               + 2 * w_out * kw_taps * cin * 2    # fused matmul operand (w/ margin)
               + 2 * w_out * cout * 4             # f32 accumulator / epilogue
               + 2 * w_out * cout * 4)            # double-buffered f32 output
    fixed = (2 * kh_taps * kw_taps * cin * cout * 2   # weights
             + 2 * (kh_taps - 1) * wp * cin * 2)      # halo rows
    avail = max(_TILE_VMEM_BUDGET - fixed, per_row)
    t = max(1, min(h_rows, avail // per_row))
    halo = max(kh_taps - 1, 1)
    return int(max(halo, (t // halo) * halo))


def _fused_conv(xp, wmat, bias_row, *, kh_taps, kw_taps, w_out, tile_rows):
    """Pallas conv over xp. Returns (N, n_tiles*tile_rows, w_out, Cout) float32."""
    n, hp, wp, cin = xp.shape
    cout = wmat.shape[2]
    halo = kh_taps - 1
    assert tile_rows % halo == 0
    n_tiles = (hp - halo) // tile_rows
    assert n_tiles * tile_rows + halo == hp
    halo_step = tile_rows // halo

    kernel = functools.partial(_conv_taps_kernel, kh_taps=kh_taps, kw_taps=kw_taps)
    flops = 2 * n * n_tiles * tile_rows * w_out * kh_taps * kw_taps * cin * cout
    bytes_accessed = (xp.size * xp.dtype.itemsize
                      + wmat.size * wmat.dtype.itemsize
                      + bias_row.size * 4
                      + n * n_tiles * tile_rows * w_out * cout * 4)

    return pl.pallas_call(
        kernel,
        out_shape=jax.ShapeDtypeStruct((n, n_tiles * tile_rows, w_out, cout),
                                       jnp.float32),
        grid=(n, n_tiles),
        in_specs=[
            # main rows of the tile
            pl.BlockSpec((1, tile_rows, wp, cin), lambda b, i: (b, i, 0, 0)),
            # (kh_taps - 1) halo rows right below the tile (same array, tiny block)
            pl.BlockSpec((1, halo, wp, cin),
                         lambda b, i: (b, (i + 1) * halo_step, 0, 0)),
            # weights / bias: constant block index -> DMA'd once, stays resident
            pl.BlockSpec((kh_taps, kw_taps * cin, cout), lambda b, i: (0, 0, 0)),
            pl.BlockSpec((1, cout), lambda b, i: (0, 0)),
        ],
        out_specs=pl.BlockSpec((1, tile_rows, w_out, cout),
                               lambda b, i: (b, i, 0, 0)),
        compiler_params=pltpu.CompilerParams(
            dimension_semantics=("parallel", "parallel"),
            vmem_limit_bytes=_VMEM_LIMIT_BYTES),
        cost_estimate=pl.CostEstimate(flops=flops, transcendentals=0,
                                      bytes_accessed=bytes_accessed),
    )(xp, xp, wmat, bias_row)


# ----------------------------------------------------------------------------
# Weight preparation (done once at module construction).
# ----------------------------------------------------------------------------
def _build_upsample_params(w, b, dim):
    """Phase-decomposed (sub-pixel) weights for nearest-2x + 3x3 conv (padding=1).

    For output phase (pi, pj), the conv over the 2x-upsampled image collapses to
    a 3x3 conv over the ORIGINAL image (padded by 1), where original tap kh lands
    on padded-row offset 1 + (pi + kh - 1)//2 (same for columns). The 4 phases
    become 4*Cout output channels of one fused conv.
    """
    cin, cout = dim, dim // 2
    cin_eff = _round_up(cin, 128)
    cout_pad = _round_up(cout, 32)          # 4 * cout_pad is a multiple of 128
    cout_eff = 4 * cout_pad

    w_eff = jnp.zeros((3, 3, cin, 2, 2, cout), jnp.float32)
    for pi in range(2):
        for pj in range(2):
            for kh in range(3):
                dr = 1 + (pi + kh - 1) // 2
                for kw in range(3):
                    dc = 1 + (pj + kw - 1) // 2
                    w_eff = w_eff.at[dr, dc, :, pi, pj, :].add(w[:, :, kh, kw].T)

    w_full = jnp.zeros((3, 3, cin_eff, 2, 2, cout_pad), jnp.float32)
    w_full = w_full.at[:, :, :cin, :, :, :cout].set(w_eff)
    wmat = w_full.reshape(3, 3 * cin_eff, cout_eff).astype(jnp.bfloat16)

    bias = jnp.zeros((2, 2, cout_pad), jnp.float32).at[:, :, :cout].set(b)
    bias_row = bias.reshape(1, cout_eff)
    return wmat, bias_row, cout, cout_pad


def _build_downsample_params(w, b, dim):
    """Space-to-depth weights: ZeroPad2d((0,1,0,1)) + 3x3 stride-2 conv becomes a
    2x2 unit-stride conv over the 2x2-phase-split (4*C channel) image."""
    cin = cout = dim
    cin_eff = _round_up(4 * cin, 128)
    cout_eff = _round_up(cout, 128)

    w_pad4 = jnp.zeros((cout, cin, 4, 4), jnp.float32).at[:, :, :3, :3].set(w)
    # (o, c, kh=2a+di, kw=2b+dj) -> (a, b, di, dj, c, o)
    w_r = jnp.transpose(w_pad4.reshape(cout, cin, 2, 2, 2, 2), (2, 4, 3, 5, 1, 0))
    w_r = w_r.reshape(2, 2, 4 * cin, cout)
    w_full = jnp.zeros((2, 2, cin_eff, cout_eff), jnp.float32)
    w_full = w_full.at[:, :, :4 * cin, :cout].set(w_r)
    wmat = w_full.reshape(2, 2 * cin_eff, cout_eff).astype(jnp.bfloat16)

    bias_row = jnp.zeros((1, cout_eff), jnp.float32).at[0, :cout].set(b)
    return wmat, bias_row, cout


# ----------------------------------------------------------------------------
# Jitted forward paths.
# ----------------------------------------------------------------------------
@functools.partial(jax.jit, static_argnames=("cout", "cout_pad", "tile_rows"))
def _upsample_forward(x, wmat, bias_row, *, cout, cout_pad, tile_rows):
    B, C, T, H, W = x.shape
    cin_eff = wmat.shape[1] // 3
    cout_eff = wmat.shape[2]

    # single layout pass: NCTHW -> (B*T, H, W, C), cast bf16, pad (fused by XLA)
    xb = jnp.transpose(x, (0, 2, 3, 4, 1)).reshape(B * T, H, W, C)
    xb = xb.astype(jnp.bfloat16)

    t_rows = tile_rows if tile_rows is not None else _pick_tile_rows(
        H, W + 2, W, cin_eff, cout_eff, 3, 3)
    t_rows = max(2, (t_rows // 2) * 2)              # halo is 2 rows -> even tiles
    n_tiles = -(-H // t_rows)
    hp = n_tiles * t_rows + 2
    xp = jnp.pad(xb, ((0, 0), (1, hp - H - 1), (1, 1), (0, cin_eff - C)))

    y = _fused_conv(xp, wmat, bias_row, kh_taps=3, kw_taps=3, w_out=W,
                    tile_rows=t_rows)               # (B*T, n_tiles*t_rows, W, 4*cout_pad)

    # depth-to-space of the 4 phases + NHWC -> NCTHW in one transpose
    y = y[:, :H].reshape(B, T, H, W, 2, 2, cout_pad)[..., :cout]
    y = jnp.transpose(y, (0, 6, 1, 2, 4, 3, 5)).reshape(B, cout, T, 2 * H, 2 * W)
    return y


@functools.partial(jax.jit, static_argnames=("cout", "tile_rows"))
def _downsample_forward(x, wmat, bias_row, *, cout, tile_rows):
    B, C, T, H, W = x.shape
    cin_eff = wmat.shape[1] // 2
    cout_eff = wmat.shape[2]
    h_out = (H - 2) // 2 + 1
    w_out = (W - 2) // 2 + 1

    xb = jnp.transpose(x, (0, 2, 3, 4, 1)).reshape(B * T, H, W, C)
    xb = xb.astype(jnp.bfloat16)

    t_rows = tile_rows if tile_rows is not None else _pick_tile_rows(
        h_out, w_out + 1, w_out, cin_eff, cout_eff, 2, 2)
    t_rows = max(1, t_rows)
    n_tiles = -(-h_out // t_rows)
    r_rows = n_tiles * t_rows + 1                   # phase rows (incl. 1 halo row)
    s_cols = w_out + 1

    # one space-to-depth pass (also provides the ZeroPad2d((0,1,0,1)) zeros)
    xpad = jnp.pad(xb, ((0, 0), (0, 2 * r_rows - H), (0, 2 * s_cols - W), (0, 0)))
    xs2d = xpad.reshape(B * T, r_rows, 2, s_cols, 2, C)
    xs2d = jnp.transpose(xs2d, (0, 1, 3, 2, 4, 5)).reshape(B * T, r_rows, s_cols, 4 * C)
    xs2d = jnp.pad(xs2d, ((0, 0), (0, 0), (0, 0), (0, cin_eff - 4 * C)))

    y = _fused_conv(xs2d, wmat, bias_row, kh_taps=2, kw_taps=2, w_out=w_out,
                    tile_rows=t_rows)               # (B*T, n_tiles*t_rows, w_out, cout_eff)

    y = y[:, :h_out, :, :cout].reshape(B, T, h_out, w_out, cout)
    return jnp.transpose(y, (0, 4, 1, 2, 3))


# ----------------------------------------------------------------------------
# Module wrapper.
# ----------------------------------------------------------------------------
class Resample:
    """JAX/Pallas port of the PyTorch `Resample` module (forward, feat_cache=None)."""

    def __init__(self, dim, mode, key, tile_rows=None):
        assert mode in ('none', 'upsample2d', 'upsample3d',
                        'downsample2d', 'downsample3d')
        self.dim = dim
        self.mode = mode
        self.tile_rows = tile_rows
        self.w = None
        self.b = None
        if mode == 'none':
            return
        if mode in ('upsample2d', 'upsample3d'):
            cout, cin = dim // 2, dim
        else:
            cout, cin = dim, dim
        # Deterministic synthetic weights matching PyTorch Conv2d default shapes.
        k1, k2 = jax.random.split(key)
        bound = 1.0 / ((cin * 9) ** 0.5)
        w = jax.random.uniform(k1, (cout, cin, 3, 3), jnp.float32,
                               minval=-bound, maxval=bound)
        b = jax.random.uniform(k2, (cout,), jnp.float32,
                               minval=-bound, maxval=bound)
        # Keep weights bf16-representable so the in-kernel bf16 matmul and the
        # f32 reference agree tightly.
        self.w = w.astype(jnp.bfloat16).astype(jnp.float32)
        self.b = b
        if mode in ('upsample2d', 'upsample3d'):
            (self._wmat, self._bias_row,
             self._cout, self._cout_pad) = _build_upsample_params(self.w, self.b, dim)
        else:
            (self._wmat, self._bias_row,
             self._cout) = _build_downsample_params(self.w, self.b, dim)
        # TODO(synk): time_conv (CausalConv3d) only runs on the stateful
        # feat_cache path (feat_cache is not None), which is out of scope here.

    def __call__(self, x, feat_cache=None, feat_idx=None):
        # x: (B, C, T, H, W) float32 (NCTHW), same as the PyTorch module.
        assert feat_cache is None  # TODO(synk): stateful feat_cache branch not implemented
        if self.mode == 'none':
            return x
        if self.mode in ('upsample2d', 'upsample3d'):
            return _upsample_forward(x, self._wmat, self._bias_row,
                                     cout=self._cout, cout_pad=self._cout_pad,
                                     tile_rows=self.tile_rows)
        return _downsample_forward(x, self._wmat, self._bias_row,
                                   cout=self._cout, tile_rows=self.tile_rows)


def _ref_forward(x, w, b, mode):
    """Pure-JAX reference mirroring the PyTorch forward (feat_cache=None)."""
    if mode == 'none':
        return x
    B, C, T, H, W = x.shape
    x2d = jnp.transpose(x, (0, 2, 1, 3, 4)).reshape(B * T, C, H, W)
    if mode in ('upsample2d', 'upsample3d'):
        # nearest-exact 2x == repeat by 2
        x2d = jnp.repeat(jnp.repeat(x2d, 2, axis=2), 2, axis=3)
        y = jax.lax.conv_general_dilated(
            x2d, w, window_strides=(1, 1), padding=((1, 1), (1, 1)),
            dimension_numbers=('NCHW', 'OIHW', 'NCHW'))
    else:
        x2d = jnp.pad(x2d, ((0, 0), (0, 0), (0, 1), (0, 1)))
        y = jax.lax.conv_general_dilated(
            x2d, w, window_strides=(2, 2), padding='VALID',
            dimension_numbers=('NCHW', 'OIHW', 'NCHW'))
    y = y + b[None, :, None, None]
    N, Co, Ho, Wo = y.shape
    return y.reshape(B, T, Co, Ho, Wo).transpose(0, 2, 1, 3, 4)


if __name__ == "__main__":
    root = jax.random.PRNGKey(0)
    kx, k1, k2, k3, k4 = jax.random.split(root, 5)

    def run_case(mode, dim, shape, mkey, tile_rows=None):
        B, T, H, W = shape
        x = jax.random.normal(kx, (B, dim, T, H, W), jnp.float32)
        m = Resample(dim, mode, mkey, tile_rows=tile_rows)
        out = jax.block_until_ready(m(x))
        if mode == 'none':
            assert out.shape == x.shape
            assert jnp.allclose(out, x)
            return
        # kernel runs in bf16 -> compare against the bf16-rounded-input reference
        x_q = x.astype(jnp.bfloat16).astype(jnp.float32)
        ref = _ref_forward(x_q, m.w, m.b, mode)
        assert out.shape == ref.shape, (mode, out.shape, ref.shape)
        err = float(jnp.max(jnp.abs(out - ref)))
        assert jnp.allclose(out, ref, atol=2e-2, rtol=2e-2), (mode, err)

    # primary shapes: (B, C, T, H, W) = (2, 8, 3, 16, 16)
    run_case('upsample2d', 8, (2, 3, 16, 16), k1)       # -> (2, 4, 3, 32, 32)
    run_case('downsample3d', 8, (2, 3, 16, 16), k2)     # -> (2, 8, 3, 8, 8)
    # multi-tile (halo) and odd-size paths
    run_case('upsample3d', 8, (1, 2, 10, 12), k3, tile_rows=4)
    run_case('downsample2d', 8, (1, 2, 15, 9), k4, tile_rows=3)
    run_case('none', 8, (2, 3, 16, 16), k1)

    print("KERNEL_OK")
</pallas_src>

<mosaic_0001>
module attributes {stable_mosaic.version = 11 : i64} {
  func.func @_conv_taps_kernel(%arg0: i32, %arg1: i32, %arg2: memref<1x16x18x128xbf16, #tpu.memory_space<vmem>>, %arg3: memref<1x2x18x128xbf16, #tpu.memory_space<vmem>>, %arg4: memref<3x384x128xbf16, #tpu.memory_space<vmem>>, %arg5: memref<1x128xf32, #tpu.memory_space<vmem>>, %arg6: memref<1x16x16x128xf32, #tpu.memory_space<vmem>>) attributes {dimension_semantics = [#tpu.dimension_semantics<parallel>, #tpu.dimension_semantics<parallel>], iteration_bounds = array<i64: 6, 1>, scalar_prefetch = 0 : i64, scratch_operands = 0 : i64, tpu.core_type = #tpu.core_type<tc>, window_params = [{transform_indices = @transform_0, window_bounds = array<i64: 1, 16, 18, 128>}, {transform_indices = @transform_1, window_bounds = array<i64: 1, 2, 18, 128>}, {pipeline_mode = #tpu.pipeline_mode<synchronous>, transform_indices = @transform_2, window_bounds = array<i64: 3, 384, 128>}, {pipeline_mode = #tpu.pipeline_mode<synchronous>, transform_indices = @transform_3, window_bounds = array<i64: 1, 128>}, {transform_indices = @transform_4, window_bounds = array<i64: 1, 16, 16, 128>}]} {
    %c0 = arith.constant 0 : index
    %c0_0 = arith.constant 0 : index
    %c0_1 = arith.constant 0 : index
    %c0_2 = arith.constant 0 : index
    %0 = vector.load %arg2[%c0, %c0_0, %c0_1, %c0_2] : memref<1x16x18x128xbf16, #tpu.memory_space<vmem>>, vector<1x16x18x128xbf16>
    %1 = vector.shape_cast %0 : vector<1x16x18x128xbf16> to vector<16x18x128xbf16>
    %c0_3 = arith.constant 0 : index
    %c0_4 = arith.constant 0 : index
    %c0_5 = arith.constant 0 : index
    %c0_6 = arith.constant 0 : index
    %2 = vector.load %arg3[%c0_3, %c0_4, %c0_5, %c0_6] : memref<1x2x18x128xbf16, #tpu.memory_space<vmem>>, vector<1x2x18x128xbf16>
    %3 = vector.shape_cast %2 : vector<1x2x18x128xbf16> to vector<2x18x128xbf16>
    %4 = tpu.concatenate %1, %3 in 0 : vector<16x18x128xbf16>, vector<2x18x128xbf16> -> vector<18x18x128xbf16>
    %cst = arith.constant 0.000000e+00 : f32
    %5 = vector.broadcast %cst : f32 to vector<256x128xf32>
    %6 = vector.extract_strided_slice %4 {offsets = [0, 0, 0], sizes = [16, 18, 128], strides = [1, 1, 1]} : vector<18x18x128xbf16> to vector<16x18x128xbf16>
    %7 = vector.extract_strided_slice %6 {offsets = [0, 0, 0], sizes = [16, 16, 128], strides = [1, 1, 1]} : vector<16x18x128xbf16> to vector<16x16x128xbf16>
    %8 = vector.extract_strided_slice %6 {offsets = [0, 1, 0], sizes = [16, 16, 128], strides = [1, 1, 1]} : vector<16x18x128xbf16> to vector<16x16x128xbf16>
    %9 = vector.extract_strided_slice %6 {offsets = [0, 2, 0], sizes = [16, 16, 128], strides = [1, 1, 1]} : vector<16x18x128xbf16> to vector<16x16x128xbf16>
    %10 = tpu.concatenate %7, %8, %9 in 2 : vector<16x16x128xbf16>, vector<16x16x128xbf16>, vector<16x16x128xbf16> -> vector<16x16x384xbf16>
    %11 = vector.shape_cast %10 : vector<16x16x384xbf16> to vector<256x384xbf16>
    %c0_7 = arith.constant 0 : index
    %c0_8 = arith.constant 0 : index
    %c0_9 = arith.constant 0 : index
    %12 = vector.load %arg4[%c0_7, %c0_8, %c0_9] : memref<3x384x128xbf16, #tpu.memory_space<vmem>>, vector<1x384x128xbf16>
    %13 = vector.shape_cast %12 : vector<1x384x128xbf16> to vector<384x128xbf16>
    %cst_10 = arith.constant dense<0.000000e+00> : vector<256x128xf32>
    %14 = tpu.matmul %11, %13, %cst_10 {dimension_numbers = #tpu.dot_dimension_numbers<[1], [0], [0], [1], [0, 0, 1, 1], [], []>} : vector<256x384xbf16>, vector<384x128xbf16>, vector<256x128xf32> -> vector<256x128xf32>
    %15 = arith.addf %5, %14 : vector<256x128xf32>
    %16 = vector.extract_strided_slice %4 {offsets = [1, 0, 0], sizes = [16, 18, 128], strides = [1, 1, 1]} : vector<18x18x128xbf16> to vector<16x18x128xbf16>
    %17 = vector.extract_strided_slice %16 {offsets = [0, 0, 0], sizes = [16, 16, 128], strides = [1, 1, 1]} : vector<16x18x128xbf16> to vector<16x16x128xbf16>
    %18 = vector.extract_strided_slice %16 {offsets = [0, 1, 0], sizes = [16, 16, 128], strides = [1, 1, 1]} : vector<16x18x128xbf16> to vector<16x16x128xbf16>
    %19 = vector.extract_strided_slice %16 {offsets = [0, 2, 0], sizes = [16, 16, 128], strides = [1, 1, 1]} : vector<16x18x128xbf16> to vector<16x16x128xbf16>
    %20 = tpu.concatenate %17, %18, %19 in 2 : vector<16x16x128xbf16>, vector<16x16x128xbf16>, vector<16x16x128xbf16> -> vector<16x16x384xbf16>
    %21 = vector.shape_cast %20 : vector<16x16x384xbf16> to vector<256x384xbf16>
    %c1 = arith.constant 1 : index
    %c0_11 = arith.constant 0 : index
    %c0_12 = arith.constant 0 : index
    %22 = vector.load %arg4[%c1, %c0_11, %c0_12] : memref<3x384x128xbf16, #tpu.memory_space<vmem>>, vector<1x384x128xbf16>
    %23 = vector.shape_cast %22 : vector<1x384x128xbf16> to vector<384x128xbf16>
    %cst_13 = arith.constant dense<0.000000e+00> : vector<256x128xf32>
    %24 = tpu.matmul %21, %23, %cst_13 {dimension_numbers = #tpu.dot_dimension_numbers<[1], [0], [0], [1], [0, 0, 1, 1], [], []>} : vector<256x384xbf16>, vector<384x128xbf16>, vector<256x128xf32> -> vector<256x128xf32>
    %25 = arith.addf %15, %24 : vector<256x128xf32>
    %26 = vector.extract_strided_slice %4 {offsets = [2, 0, 0], sizes = [16, 18, 128], strides = [1, 1, 1]} : vector<18x18x128xbf16> to vector<16x18x128xbf16>
    %27 = vector.extract_strided_slice %26 {offsets = [0, 0, 0], sizes = [16, 16, 128], strides = [1, 1, 1]} : vector<16x18x128xbf16> to vector<16x16x128xbf16>
    %28 = vector.extract_strided_slice %26 {offsets = [0, 1, 0], sizes = [16, 16, 128], strides = [1, 1, 1]} : vector<16x18x128xbf16> to vector<16x16x128xbf16>
    %29 = vector.extract_strided_slice %26 {offsets = [0, 2, 0], sizes = [16, 16, 128], strides = [1, 1, 1]} : vector<16x18x128xbf16> to vector<16x16x128xbf16>
    %30 = tpu.concatenate %27, %28, %29 in 2 : vector<16x16x128xbf16>, vector<16x16x128xbf16>, vector<16x16x128xbf16> -> vector<16x16x384xbf16>
    %31 = vector.shape_cast %30 : vector<16x16x384xbf16> to vector<256x384xbf16>
    %c2 = arith.constant 2 : index
    %c0_14 = arith.constant 0 : index
    %c0_15 = arith.constant 0 : index
    %32 = vector.load %arg4[%c2, %c0_14, %c0_15] : memref<3x384x128xbf16, #tpu.memory_space<vmem>>, vector<1x384x128xbf16>
    %33 = vector.shape_cast %32 : vector<1x384x128xbf16> to vector<384x128xbf16>
    %cst_16 = arith.constant dense<0.000000e+00> : vector<256x128xf32>
    %34 = tpu.matmul %31, %33, %cst_16 {dimension_numbers = #tpu.dot_dimension_numbers<[1], [0], [0], [1], [0, 0, 1, 1], [], []>} : vector<256x384xbf16>, vector<384x128xbf16>, vector<256x128xf32> -> vector<256x128xf32>
    %35 = arith.addf %25, %34 : vector<256x128xf32>
    %c0_17 = arith.constant 0 : index
    %c0_18 = arith.constant 0 : index
    %36 = vector.load %arg5[%c0_17, %c0_18] : memref<1x128xf32, #tpu.memory_space<vmem>>, vector<1x128xf32>
    %37 = vector.broadcast %36 : vector<1x128xf32> to vector<256x128xf32>
    %38 = arith.addf %35, %37 : vector<256x128xf32>
    %39 = vector.shape_cast %38 : vector<256x128xf32> to vector<16x16x128xf32>
    %c0_19 = arith.constant 0 : index
    %c0_20 = arith.constant 0 : index
    %c0_21 = arith.constant 0 : index
    %c0_22 = arith.constant 0 : index
    %40 = vector.load %arg6[%c0_19, %c0_20, %c0_21, %c0_22] : memref<1x16x16x128xf32, #tpu.memory_space<vmem>>, vector<1x16x16x128xf32>
    %41 = vector.shape_cast %40 : vector<1x16x16x128xf32> to vector<16x16x128xf32>
    %42 = vector.shape_cast %39 : vector<16x16x128xf32> to vector<1x16x16x128xf32>
    tpu.vector_store %arg6[%c0_19, %c0_20, %c0_21, %c0_22], %42 {strides = array<i32>} : memref<1x16x16x128xf32, #tpu.memory_space<vmem>>, vector<1x16x16x128xf32>,
    return
  }
  func.func @transform_0(%arg0: i32, %arg1: i32) -> (i32, i32, i32, i32) {
    %c0_i32 = arith.constant 0 : i32
    %c0_i32_0 = arith.constant 0 : i32
    %c0_i32_1 = arith.constant 0 : i32
    return %arg0, %arg1, %c0_i32, %c0_i32_0 : i32, i32, i32, i32
  }
  func.func @transform_1(%arg0: i32, %arg1: i32) -> (i32, i32, i32, i32) {
    %c1_i32 = arith.constant 1 : i32
    %0 = arith.addi %arg1, %c1_i32 : i32
    %c8_i32 = arith.constant 8 : i32
    %1 = arith.muli %0, %c8_i32 : i32
    %c0_i32 = arith.constant 0 : i32
    %c0_i32_0 = arith.constant 0 : i32
    %c0_i32_1 = arith.constant 0 : i32
    return %arg0, %1, %c0_i32, %c0_i32_0 : i32, i32, i32, i32
  }
  func.func @transform_2(%arg0: i32, %arg1: i32) -> (i32, i32, i32) {
    %c0_i32 = arith.constant 0 : i32
    %c0_i32_0 = arith.constant 0 : i32
    %c0_i32_1 = arith.constant 0 : i32
    %c0_i32_2 = arith.constant 0 : i32
    return %c0_i32, %c0_i32_0, %c0_i32_1 : i32, i32, i32
  }
  func.func @transform_3(%arg0: i32, %arg1: i32) -> (i32, i32) {
    %c0_i32 = arith.constant 0 : i32
    %c0_i32_0 = arith.constant 0 : i32
    %c0_i32_1 = arith.constant 0 : i32
    return %c0_i32, %c0_i32_0 : i32, i32
  }
  func.func @transform_4(%arg0: i32, %arg1: i32) -> (i32, i32, i32, i32) {
    %c0_i32 = arith.constant 0 : i32
    %c0_i32_0 = arith.constant 0 : i32
    %c0_i32_1 = arith.constant 0 : i32
    return %arg0, %arg1, %c0_i32, %c0_i32_0 : i32, i32, i32, i32
  }
}

</mosaic_0001>

<llo_original>
// kernel: _upsample_forward.1
$region0: #{_upsample_forward.1}
  #allocation0 [shape = 'u32[]', space=smem, size = 0x4, offset = 0x4, fixed_abs, tag = 'smem constant byte address 0x4 - core index']
  #allocation1 [shape = 'u32[144,128]{1,0:T(1,128)}', space=vmem, size = 0x12000, scoped, tag = 'internal scratch']
  %s0 = inlined_call_operand.vmem [shape: bf16[6,18,18,128], index: 0, kind: input, shape index: {}, may-alias: {0,1}]
  %s1 = inlined_call_operand.vmem [shape: bf16[6,18,18,128], index: 1, kind: input, shape index: {}, may-alias: {0,1}]
  %s2 = inlined_call_operand.hbm [shape: bf16[3,384,128], index: 2, kind: input, shape index: {}]
  %s3 = inlined_call_operand.hbm [shape: f32[1,128], index: 3, kind: input, shape index: {}]
  %s4 = inlined_call_operand.vmem [shape: f32[6,16,16,128], index: 4, kind: output, shape index: {}]
  %s5 = sld [smem:[#allocation0]]
  $region57: #{_upsample_forward.1} parent=0
    _
  %s7 = ssub.s32 1, %s5
  %s8 = scalar_select 0, %s7, %s5
  $region1: #{_upsample_forward.1} parent=0
    #allocation2 [shape = 'u8[294912]{0}', space=vmem, size = 0x48000, scoped, tag = 'input window, operand 2, single buffered']
    #allocation3 [shape = 's32[2]{0}', space=sflag, size = 0x8, scoped, tag = 'scoped memory for _upsample_forward.1']
    #allocation4 [shape = 'u8[512]{0}', space=vmem, size = 0x400, scoped, tag = 'input window, operand 3, single buffered']
    #allocation5 [shape = 's32[1]{0}', space=sflag, size = 0x4, scoped, tag = 'scoped memory for _upsample_forward.1']
    %9 = vsyncpa [#allocation3], 0
    %10 = vsyncpa [#allocation5], 0
    loop: start=0, step=1, limit=8
    $region2: #{_upsample_forward.1} parent=1 // loop_pre_header
      _
    $region3: #{_upsample_forward.1} parent=1 // loop_header
      %s12 = sphi 0, %s16
      %p13 = scmp.ge.s32.totalorder %s12, 8
      %s19 = sphi 0, %s31
      %s20 = sphi 0, %s27
      %s21 = sphi 0, %s19
      %s22 = sphi 0, %s20
      %s23 = sphi 0, %s21
      %s24 = sphi 0, %s22
      %s36 = sphi 0, %s38
      %s39 = sphi 0, %s36
      %s40 = sphi 0, %s39
      %s56 = sphi 0, %s40
      %s68 = sphi 0, %s70
      %s71 = sphi 0, %s68
      %s72 = sphi 0, %s71
      %s88 = sphi 0, %s72
      %s92 = sphi 0, %s92
      %s94 = sphi 0, %s92
      %s95 = sphi 0, %s94
      %s109 = sphi 0, %s95
      %s113 = sphi 0, %s113
      %s115 = sphi 0, %s113
      %s116 = sphi 0, %s115
      %s130 = sphi 0, %s116
      %s138 = sphi 0, %s140
      %s141 = sphi 0, %s138
      %s142 = sphi 0, %s141
      %s158 = sphi 0, %s142
    $region4: #{_upsample_forward.1} parent=1 // loop_header_branch
      %15 = sbr.rel (%p13) target = $region8
    $region5: #{_upsample_forward.1} parent=1 // loop_body
      %s17 = ssub.s32 %s12, 1
      %s18 = ssub.s32 %s12, 2
      %s25 = sadd.s32 1, %s20
      %p26 = scmp.ge.s32.totalorder %s25, 1
      %s27 = scalar_select %p26, 0, %s25
      %s28 = sadd.s32 1, %s19
      %s29 = scalar_select %p26, %s28, %s19
      %p30 = scmp.ge.s32.totalorder %s29, 6
      %s31 = scalar_select %p30, 0, %s29
      %s32 = ssub.s32 %s19, %s31
      %s33 = ssub.s32 %s20, %s27
      %s34 = sor.u32 %s32, %s33
      %p35 = scmp.eq.s32.totalorder %s34, 0
      %s37 = sadd.s32 %s36, 1
      %s38 = scalar_select %p35, %s36, %s37
      %p41 = pneg %p35
      %p42 = scmp.eq.s32.totalorder %s12, 5
      %p43 = por %p41, %p42
      %p44 = scmp.ne.s32.totalorder %s36, %s39
      %p45 = scmp.eq.s32.totalorder %s12, 0
      %p46 = por %p44, %p45
      %p47 = scmp.ne.s32.totalorder %s36, %s39
      %p48 = scmp.eq.s32.totalorder %s17, 5
      %p49 = por %p47, %p48
      %p50 = scmp.ne.s32.totalorder %s39, %s40
      %p51 = scmp.eq.s32.totalorder %s17, 0
      %p52 = por %p50, %p51
      %p53 = scmp.ne.s32.totalorder %s39, %s40
      %p54 = scmp.eq.s32.totalorder %s18, 5
      %p55 = por %p53, %p54
      %p57 = scmp.ne.s32.totalorder %s40, %s56
      %p58 = scmp.eq.s32.totalorder %s18, 0
      %p59 = por %p57, %p58
      %s60 = sadd.s32 %s20, 1
      %s61 = smul.u32 %s60, 8
      %s62 = sadd.s32 %s27, 1
      %s63 = smul.u32 %s62, 8
      %s64 = ssub.s32 %s19, %s31
      %s65 = ssub.s32 %s61, %s63
      %s66 = sor.u32 %s64, %s65
      %p67 = scmp.eq.s32.totalorder %s66, 0
      %s69 = sadd.s32 %s68, 1
      %s70 = scalar_select %p67, %s68, %s69
      %p73 = pneg %p67
      %p74 = scmp.eq.s32.totalorder %s12, 5
      %p75 = por %p73, %p74
      %p76 = scmp.ne.s32.totalorder %s68, %s71
      %p77 = scmp.eq.s32.totalorder %s12, 0
      %p78 = por %p76, %p77
      %p79 = scmp.ne.s32.totalorder %s68, %s71
      %p80 = scmp.eq.s32.totalorder %s17, 5
      %p81 = por %p79, %p80
      %p82 = scmp.ne.s32.totalorder %s71, %s72
      %p83 = scmp.eq.s32.totalorder %s17, 0
      %p84 = por %p82, %p83
      %p85 = scmp.ne.s32.totalorder %s71, %s72
      %p86 = scmp.eq.s32.totalorder %s18, 5
      %p87 = por %p85, %p86
      %p89 = scmp.ne.s32.totalorder %s72, %s88
      %p90 = scmp.eq.s32.totalorder %s18, 0
      %p91 = por %p89, %p90
      %s93 = sadd.s32 %s92, 1
      %p96 = scmp.eq.s32.totalorder %s12, 5
      %p97 = scmp.ne.s32.totalorder %s92, %s94
      %p98 = scmp.eq.s32.totalorder %s12, 0
      %p99 = por %p97, %p98
      %p100 = scmp.ne.s32.totalorder %s92, %s94
      %p101 = scmp.eq.s32.totalorder %s17, 5
      %p102 = por %p100, %p101
      %p103 = scmp.ne.s32.totalorder %s94, %s95
      %p104 = scmp.eq.s32.totalorder %s17, 0
      %p105 = por %p103, %p104
      %p106 = scmp.ne.s32.totalorder %s94, %s95
      %p107 = scmp.eq.s32.totalorder %s18, 5
      %p108 = por %p106, %p107
      %p110 = scmp.ne.s32.totalorder %s95, %s109
      %p111 = scmp.eq.s32.totalorder %s18, 0
      %p112 = por %p110, %p111
      %s114 = sadd.s32 %s113, 1
      %p117 = scmp.eq.s32.totalorder %s12, 5
      %p118 = scmp.ne.s32.totalorder %s113, %s115
      %p119 = scmp.eq.s32.totalorder %s12, 0
      %p120 = por %p118, %p119
      %p121 = scmp.ne.s32.totalorder %s113, %s115
      %p122 = scmp.eq.s32.totalorder %s17, 5
      %p123 = por %p121, %p122
      %p124 = scmp.ne.s32.totalorder %s115, %s116
      %p125 = scmp.eq.s32.totalorder %s17, 0
      %p126 = por %p124, %p125
      %p127 = scmp.ne.s32.totalorder %s115, %s116
      %p128 = scmp.eq.s32.totalorder %s18, 5
      %p129 = por %p127, %p128
      %p131 = scmp.ne.s32.totalorder %s116, %s130
      %p132 = scmp.eq.s32.totalorder %s18, 0
      %p133 = por %p131, %p132
      %s134 = ssub.s32 %s19, %s31
      %s135 = ssub.s32 %s20, %s27
      %s136 = sor.u32 %s134, %s135
      %p137 = scmp.eq.s32.totalorder %s136, 0
      %s139 = sadd.s32 %s138, 1
      %s140 = scalar_select %p137, %s138, %s139
      %p143 = pneg %p137
      %p144 = scmp.eq.s32.totalorder %s12, 5
      %p145 = por %p143, %p144
      %p146 = scmp.ne.s32.totalorder %s138, %s141
      %p147 = scmp.eq.s32.totalorder %s12, 0
      %p148 = por %p146, %p147
      %p149 = scmp.ne.s32.totalorder %s138, %s141
      %p150 = scmp.eq.s32.totalorder %s17, 5
      %p151 = por %p149, %p150
      %p152 = scmp.ne.s32.totalorder %s141, %s142
      %p153 = scmp.eq.s32.totalorder %s17, 0
      %p154 = por %p152, %p153
      %p155 = scmp.ne.s32.totalorder %s141, %s142
      %p156 = scmp.eq.s32.totalorder %s18, 5
      %p157 = por %p155, %p156
      %p159 = scmp.ne.s32.totalorder %s142, %s158
      %p160 = scmp.eq.s32.totalorder %s18, 0
      %p161 = por %p159, %p160
      %p162 = scmp.le.s32.totalorder 1, %s12
      %p163 = scmp.lt.s32.totalorder %s12, 7
      %p164 = pnand %p162, %p163
      %p165 = pneg %p164
      // Predicated region
      $region9: #{_upsample_forward.1} parent=5 // pred_check
        _
      $region10: #{_upsample_forward.1} parent=5 // pred_check_branch
        %167 = sbr.rel (%p164) target = $region12
      $region11: #{_upsample_forward.1} parent=5 // pred_region
        %s168 = ssub.s32 %s12, 1
        // Predicated region
        $region13: #{_upsample_forward.1} parent=11 // pred_check
          %p169 = pneg %p105
        $region14: #{_upsample_forward.1} parent=11 // pred_check_branch
          %171 = sbr.rel (%p169) target = $region16
        $region15: #{_upsample_forward.1} parent=11 // pred_region
          %s173 = ssub.s32 9216, 9216
          %174 = vsyncadd [#allocation3], %s173
          %s175 = sshll.u32 [#allocation2], 4
          %s176 = int_to_ptr.vmem [resolvable:$true] %s175
          %181 = dma.hbm_to_vmem [thread:$0]  %s2, 9216, %s176, [#allocation3], 64, 64, 4
        $region16: #{_upsample_forward.1} parent=11 // pred_fallthru
          _
        // Predicated region
        $region17: #{_upsample_forward.1} parent=11 // pred_check
          %p182 = pneg %p126
        $region18: #{_upsample_forward.1} parent=11 // pred_check_branch
          %184 = sbr.rel (%p182) target = $region20
        $region19: #{_upsample_forward.1} parent=11 // pred_region
          %s186 = ssub.s32 16, 16
          %187 = vsyncadd [#allocation5], %s186
          %s189 = sshll.u32 [#allocation4], 4
          %s190 = int_to_ptr.vmem [resolvable:$true] %s189
          %192 = dma.hbm_to_vmem [thread:$0]  %s3, 16, %s190, [#allocation5]
        $region20: #{_upsample_forward.1} parent=11 // pred_fallthru
          _
      $region12: #{_upsample_forward.1} parent=5 // pred_fallthru
        _
      %p193 = scmp.lt.s32.totalorder %s12, 6
      // Predicated region
      $region21: #{_upsample_forward.1} parent=5 // pred_check
        %p194 = pneg %p193
      $region22: #{_upsample_forward.1} parent=5 // pred_check_branch
        %196 = sbr.rel (%p194) target = $region24
      $region23: #{_upsample_forward.1} parent=5 // pred_region
        // Predicated region
        $region25: #{_upsample_forward.1} parent=23 // pred_check
          %p197 = pneg %p46
        $region26: #{_upsample_forward.1} parent=23 // pred_check_branch
          %199 = sbr.rel (%p197) target = $region28
        $region27: #{_upsample_forward.1} parent=23 // pred_region
          %s200 = smul.u32 16, %s20
          %s201 = ssub.s32 18, %s200
          %p202 = scmp.lt.s32.totalorder %s201, 16
          %s203 = scalar_select %p202, %s201, 16
          %s204 = smul.u32 64, %s203
          %s205 = smul.u32 %s204, 3
          %p206 = scmp.lt.s32.totalorder %s19, 5
          %s207 = scalar_select %p206, %s19, 5
          %p208 = scmp.lt.s32.totalorder %s200, 17
          %s209 = scalar_select %p208, %s200, 17
          %s210 = smul.addr %s209, 3
          %s211 = smul.addr %s207, 54
          %s212 = sadd.s32 %s210, %s211
          %s213 = smul.addr %s212, 4
          %s214 = scalar_lea.vmem %s0, %s213
          %s215 = smul.u32 16, %s20
          %s216 = ssub.s32 18, %s215
          %p217 = scmp.lt.s32.totalorder %s216, 16
          %s218 = scalar_select %p217, %s216, 16
          %s219 = smul.u32 64, %s218
          %s220 = smul.u32 %s219, 3
        $region28: #{_upsample_forward.1} parent=23 // pred_fallthru
          _
        // Predicated region
        $region29: #{_upsample_forward.1} parent=23 // pred_check
          %p221 = pneg %p78
        $region30: #{_upsample_forward.1} parent=23 // pred_check_branch
          %223 = sbr.rel (%p221) target = $region32
        $region31: #{_upsample_forward.1} parent=23 // pred_region
          %s224 = sadd.s32 %s20, 1
          %s225 = smul.u32 %s224, 8
          %s226 = smul.u32 2, %s225
          %p227 = scmp.lt.s32.totalorder %s19, 5
          %s228 = scalar_select %p227, %s19, 5
          %p229 = scmp.lt.s32.totalorder %s226, 17
          %s230 = scalar_select %p229, %s226, 17
          %s231 = smul.addr %s230, 3
          %s232 = smul.addr %s228, 54
          %s233 = sadd.s32 %s231, %s232
          %s234 = smul.addr %s233, 4
          %s235 = scalar_lea.vmem %s1, %s234
          %s236 = sadd.s32 %s20, 1
          %s237 = smul.u32 %s236, 8
          %s238 = smul.u32 2, %s237
        $region32: #{_upsample_forward.1} parent=23 // pred_fallthru
          _
      $region24: #{_upsample_forward.1} parent=5 // pred_fallthru
        _
      %p239 = scmp.le.s32.totalorder 1, %s12
      %p240 = scmp.lt.s32.totalorder %s12, 7
      %p241 = pnand %p239, %p240
      %p242 = pneg %p241
      // Predicated region
      $region33: #{_upsample_forward.1} parent=5 // pred_check
        _
      $region34: #{_upsample_forward.1} parent=5 // pred_check_branch
        %244 = sbr.rel (%p241) target = $region36
      $region35: #{_upsample_forward.1} parent=5 // pred_region
        %s245 = ssub.s32 %s12, 1
        // Predicated region
        $region37: #{_upsample_forward.1} parent=35 // pred_check
          %p246 = pneg %p105
        $region38: #{_upsample_forward.1} parent=35 // pred_check_branch
          %248 = sbr.rel (%p246) target = $region40
        $region39: #{_upsample_forward.1} parent=35 // pred_region
          %249 = dma.done [#allocation3], 9216
        $region40: #{_upsample_forward.1} parent=35 // pred_fallthru
          _
        // Predicated region
        $region41: #{_upsample_forward.1} parent=35 // pred_check
          %p250 = pneg %p126
        $region42: #{_upsample_forward.1} parent=35 // pred_check_branch
          %252 = sbr.rel (%p250) target = $region44
        $region43: #{_upsample_forward.1} parent=35 // pred_region
          %253 = dma.done [#allocation5], 16
        $region44: #{_upsample_forward.1} parent=35 // pred_fallthru
          _
        %s254 = smul.u32 16, %s22
        %s255 = ssub.s32 18, %s254
        %p256 = scmp.lt.s32.totalorder %s255, 16
        %s257 = scalar_select %p256, %s255, 16
        %s258 = smul.u32 64, %s257
        %s259 = smul.u32 %s258, 3
        %p260 = scmp.lt.s32.totalorder %s21, 5
        %s261 = scalar_select %p260, %s21, 5
        %p262 = scmp.lt.s32.totalorder %s254, 17
        %s263 = scalar_select %p262, %s254, 17
        %s264 = smul.addr %s263, 3
        %s265 = smul.addr %s261, 54
        %s266 = sadd.s32 %s264, %s265
        %s267 = smul.addr %s266, 4
        %s268 = scalar_lea.vmem %s0, %s267
        %p269 = pneg %p52
        %p270 = pneg %p49
        %s271 = sadd.s32 %s22, 1
        %s272 = smul.u32 %s271, 8
        %s273 = smul.u32 2, %s272
        %p274 = scmp.lt.s32.totalorder %s21, 5
        %s275 = scalar_select %p274, %s21, 5
        %p276 = scmp.lt.s32.totalorder %s273, 17
        %s277 = scalar_select %p276, %s273, 17
        %s278 = smul.addr %s277, 3
        %s279 = smul.addr %s275, 54
        %s280 = sadd.s32 %s278, %s279
        %s281 = smul.addr %s280, 4
        %s282 = scalar_lea.vmem %s1, %s281
        %p283 = pneg %p84
        %p284 = pneg %p81
        %p285 = pneg %p105
        %p286 = pneg %p102
        %p287 = pneg %p126
        %p288 = pneg %p123
        %p289 = pneg %p154
        %p290 = pneg %p151
        %s291 = smul.u32 16, %s22
        %p292 = scmp.lt.s32.totalorder %s21, 5
        %s293 = scalar_select %p292, %s21, 5
        %p294 = scmp.lt.s32.totalorder %s291, 15
        %s295 = scalar_select %p294, %s291, 15
        %s296 = smul.addr %s295, 2
        %s297 = smul.addr %s293, 32
        %s298 = sadd.s32 %s296, %s297
        %s299 = smul.addr %s298, 8
        %s300 = scalar_lea.vmem %s4, %s299
        %s301 = smul.u32 16, %s22
        %s302 = ssub.s32 18, %s301
        %p303 = scmp.lt.s32.totalorder %s302, 16
        %s304 = scalar_select %p303, %s302, 16
        %s305 = smul.u32 64, %s304
        %s306 = smul.u32 %s305, 3
        %p307 = scmp.lt.s32.totalorder %s21, 5
        %s308 = scalar_select %p307, %s21, 5
        %p309 = scmp.lt.s32.totalorder %s301, 17
        %s310 = scalar_select %p309, %s301, 17
        %s311 = smul.addr %s310, 3
        %s312 = smul.addr %s308, 54
        %s313 = sadd.s32 %s311, %s312
        %s314 = smul.addr %s313, 4
        %s315 = scalar_lea.vmem %s0, %s314
        %s316 = smul.u32 16, %s22
        %s317 = ssub.s32 18, %s316
        %p318 = scmp.lt.s32.totalorder %s317, 16
        %s319 = scalar_select %p318, %s317, 16
        %s320 = smul.u32 64, %s319
        %s321 = smul.u32 %s320, 3
        %s322 = sadd.s32 %s22, 1
        %s323 = smul.u32 %s322, 8
        %s324 = smul.u32 2, %s323
        %p325 = scmp.lt.s32.totalorder %s21, 5
        %s326 = scalar_select %p325, %s21, 5
        %p327 = scmp.lt.s32.totalorder %s324, 17
        %s328 = scalar_select %p327, %s324, 17
        %s329 = smul.addr %s328, 3
        %s330 = smul.addr %s326, 54
        %s331 = sadd.s32 %s329, %s330
        %s332 = smul.addr %s331, 4
        %s333 = scalar_lea.vmem %s1, %s332
        %s334 = sadd.s32 %s22, 1
        %s335 = smul.u32 %s334, 8
        %s336 = smul.u32 2, %s335
        %s337 = smul.u32 16, %s22
        %p338 = scmp.lt.s32.totalorder %s21, 5
        %s339 = scalar_select %p338, %s21, 5
        %p340 = scmp.lt.s32.totalorder %s337, 15
        %s341 = scalar_select %p340, %s337, 15
        %s342 = smul.addr %s341, 2
        %s343 = smul.addr %s339, 32
        %s344 = sadd.s32 %s342, %s343
        %s345 = smul.addr %s344, 8
        %s346 = scalar_lea.vmem %s4, %s345
        %s347 = smul.u32 16, %s22
        %v349 = vld [vmem:[%s315] sm:$0xf]
        %v350 = vld [vmem:[%s315 + $0x4] sm:$0xf]
        %v351 = vld [vmem:[%s315 + $0x8] sm:$0x1]
        %v352 = vld [vmem:[%s315 + $0xc] sm:$0xf]
        %v353 = vld [vmem:[%s315 + $0x10] sm:$0xf]
        %v354 = vld [vmem:[%s315 + $0x14] sm:$0x1]
        %v355 = vld [vmem:[%s315 + $0x18] sm:$0xf]
        %v356 = vld [vmem:[%s315 + $0x1c] sm:$0xf]
        %v357 = vld [vmem:[%s315 + $0x20] sm:$0x1]
        %v358 = vld [vmem:[%s315 + $0x24] sm:$0xf]
        %v359 = vld [vmem:[%s315 + $0x28] sm:$0xf]
        %v360 = vld [vmem:[%s315 + $0x2c] sm:$0x1]
        %v361 = vld [vmem:[%s315 + $0x30] sm:$0xf]
        %v362 = vld [vmem:[%s315 + $0x34] sm:$0xf]
        %v363 = vld [vmem:[%s315 + $0x38] sm:$0x1]
        %v364 = vld [vmem:[%s315 + $0x3c] sm:$0xf]
        %v365 = vld [vmem:[%s315 + $0x40] sm:$0xf]
        %v366 = vld [vmem:[%s315 + $0x44] sm:$0x1]
        %v367 = vld [vmem:[%s315 + $0x48] sm:$0xf]
        %v368 = vld [vmem:[%s315 + $0x4c] sm:$0xf]
        %v369 = vld [vmem:[%s315 + $0x50] sm:$0x1]
        %v370 = vld [vmem:[%s315 + $0x54] sm:$0xf]
        %v371 = vld [vmem:[%s315 + $0x58] sm:$0xf]
        %v372 = vld [vmem:[%s315 + $0x5c] sm:$0x1]
        %v373 = vld [vmem:[%s315 + $0x60] sm:$0xf]
        %v374 = vld [vmem:[%s315 + $0x64] sm:$0xf]
        %v375 = vld [vmem:[%s315 + $0x68] sm:$0x1]
        %v376 = vld [vmem:[%s315 + $0x6c] sm:$0xf]
        %v377 = vld [vmem:[%s315 + $0x70] sm:$0xf]
        %v378 = vld [vmem:[%s315 + $0x74] sm:$0x1]
        %v379 = vld [vmem:[%s315 + $0x78] sm:$0xf]
        %v380 = vld [vmem:[%s315 + $0x7c] sm:$0xf]
        %v381 = vld [vmem:[%s315 + $0x80] sm:$0x1]
        %v382 = vld [vmem:[%s315 + $0x84] sm:$0xf]
        %v383 = vld [vmem:[%s315 + $0x88] sm:$0xf]
        %v384 = vld [vmem:[%s315 + $0x8c] sm:$0x1]
        %v385 = vld [vmem:[%s315 + $0x90] sm:$0xf]
        %v386 = vld [vmem:[%s315 + $0x94] sm:$0xf]
        %v387 = vld [vmem:[%s315 + $0x98] sm:$0x1]
        %v388 = vld [vmem:[%s315 + $0x9c] sm:$0xf]
        %v389 = vld [vmem:[%s315 + $0xa0] sm:$0xf]
        %v390 = vld [vmem:[%s315 + $0xa4] sm:$0x1]
        %v391 = vld [vmem:[%s315 + $0xa8] sm:$0xf]
        %v392 = vld [vmem:[%s315 + $0xac] sm:$0xf]
        %v393 = vld [vmem:[%s315 + $0xb0] sm:$0x1]
        %v394 = vld [vmem:[%s315 + $0xb4] sm:$0xf]
        %v395 = vld [vmem:[%s315 + $0xb8] sm:$0xf]
        %v396 = vld [vmem:[%s315 + $0xbc] sm:$0x1]
        %v397 = vld [vmem:[%s333] sm:$0xf]
        %v398 = vld [vmem:[%s333 + $0x4] sm:$0xf]
        %v399 = vld [vmem:[%s333 + $0x8] sm:$0x1]
        %v400 = vld [vmem:[%s333 + $0xc] sm:$0xf]
        %v401 = vld [vmem:[%s333 + $0x10] sm:$0xf]
        %v402 = vld [vmem:[%s333 + $0x14] sm:$0x1]
        %v435 = vunpack.c.l.b16 %v349
        %v436 = vunpack.c.l.b16 %v350
        %v437 = vunpack.c.l.b16 %v352
        %v438 = vunpack.c.l.b16 %v353
        %v439 = vunpack.c.l.b16 %v355
        %v440 = vunpack.c.l.b16 %v356
        %v441 = vunpack.c.l.b16 %v358
        %v442 = vunpack.c.l.b16 %v359
        %v443 = vunpack.c.l.b16 %v361
        %v444 = vunpack.c.l.b16 %v362
        %v445 = vunpack.c.l.b16 %v364
        %v446 = vunpack.c.l.b16 %v365
        %v447 = vunpack.c.l.b16 %v367
        %v448 = vunpack.c.l.b16 %v368
        %v449 = vunpack.c.l.b16 %v370
        %v450 = vunpack.c.l.b16 %v371
        %v451 = vunpack.c.l.b16 %v373
        %v452 = vunpack.c.l.b16 %v374
        %v453 = vunpack.c.l.b16 %v376
        %v454 = vunpack.c.l.b16 %v377
        %v455 = vunpack.c.l.b16 %v379
        %v456 = vunpack.c.l.b16 %v380
        %v457 = vunpack.c.l.b16 %v382
        %v458 = vunpack.c.l.b16 %v383
        %v459 = vunpack.c.l.b16 %v385
        %v460 = vunpack.c.l.b16 %v386
        %v461 = vunpack.c.l.b16 %v388
        %v462 = vunpack.c.l.b16 %v389
        %v463 = vunpack.c.l.b16 %v391
        %v464 = vunpack.c.l.b16 %v392
        %v465 = vunpack.c.l.b16 %v394
        %v466 = vunpack.c.l.b16 %v395
        %v467 = vpack.c.b16 %v436, %v435
        %v468 = vpack.c.b16 %v438, %v437
        %v469 = vpack.c.b16 %v440, %v439
        %v470 = vpack.c.b16 %v442, %v441
        %v471 = vpack.c.b16 %v444, %v443
        %v472 = vpack.c.b16 %v446, %v445
        %v473 = vpack.c.b16 %v448, %v447
        %v474 = vpack.c.b16 %v450, %v449
        %v475 = vpack.c.b16 %v452, %v451
        %v476 = vpack.c.b16 %v454, %v453
        %v477 = vpack.c.b16 %v456, %v455
        %v478 = vpack.c.b16 %v458, %v457
        %v479 = vpack.c.b16 %v460, %v459
        %v480 = vpack.c.b16 %v462, %v461
        %v481 = vpack.c.b16 %v464, %v463
        %v482 = vpack.c.b16 %v466, %v465
        %v515 = vunpack.c.l.b16 %v351
        %v516 = vunpack.c.l.b16 %v354
        %v517 = vunpack.c.l.b16 %v357
        %v518 = vunpack.c.l.b16 %v360
        %v519 = vunpack.c.l.b16 %v363
        %v520 = vunpack.c.l.b16 %v366
        %v521 = vunpack.c.l.b16 %v369
        %v522 = vunpack.c.l.b16 %v372
        %v523 = vunpack.c.l.b16 %v375
        %v524 = vunpack.c.l.b16 %v378
        %v525 = vunpack.c.l.b16 %v381
        %v526 = vunpack.c.l.b16 %v384
        %v527 = vunpack.c.l.b16 %v387
        %v528 = vunpack.c.l.b16 %v390
        %v529 = vunpack.c.l.b16 %v393
        %v530 = vunpack.c.l.b16 %v396
        %v531 = vpack.c.b16 %v515, %v515
        %v532 = vpack.c.b16 %v516, %v516
        %v533 = vpack.c.b16 %v517, %v517
        %v534 = vpack.c.b16 %v518, %v518
        %v535 = vpack.c.b16 %v519, %v519
        %v536 = vpack.c.b16 %v520, %v520
        %v537 = vpack.c.b16 %v521, %v521
        %v538 = vpack.c.b16 %v522, %v522
        %v539 = vpack.c.b16 %v523, %v523
        %v540 = vpack.c.b16 %v524, %v524
        %v541 = vpack.c.b16 %v525, %v525
        %v542 = vpack.c.b16 %v526, %v526
        %v543 = vpack.c.b16 %v527, %v527
        %v544 = vpack.c.b16 %v528, %v528
        %v545 = vpack.c.b16 %v529, %v529
        %v546 = vpack.c.b16 %v530, %v530
        %vm547 = vsmask.f32 7424
        %v549 = vshrl.u32 %v467, 16
        %v551 = vshll.u32 %v467, 16
        %v553 = vrot.slane %v551, 1
        %v554 = vor.u32 %v549, %v553
        %v556 = vshll.u32 %v531, 16
        %v558 = vrot.slane %v556, 1
        %v559 = vsel %vm547, %v554, %v558
        %v561 = vshrl.u32 %v468, 16
        %v563 = vshll.u32 %v468, 16
        %v565 = vrot.slane %v563, 1
        %v566 = vor.u32 %v561, %v565
        %v568 = vshll.u32 %v532, 16
        %v570 = vrot.slane %v568, 1
        %v571 = vsel %vm547, %v566, %v570
        %v573 = vshrl.u32 %v469, 16
        %v575 = vshll.u32 %v469, 16
        %v577 = vrot.slane %v575, 1
        %v578 = vor.u32 %v573, %v577
        %v580 = vshll.u32 %v533, 16
        %v582 = vrot.slane %v580, 1
        %v583 = vsel %vm547, %v578, %v582
        %v585 = vshrl.u32 %v470, 16
        %v587 = vshll.u32 %v470, 16
        %v589 = vrot.slane %v587, 1
        %v590 = vor.u32 %v585, %v589
        %v592 = vshll.u32 %v534, 16
        %v594 = vrot.slane %v592, 1
        %v595 = vsel %vm547, %v590, %v594
        %v597 = vshrl.u32 %v471, 16
        %v599 = vshll.u32 %v471, 16
        %v601 = vrot.slane %v599, 1
        %v602 = vor.u32 %v597, %v601
        %v604 = vshll.u32 %v535, 16
        %v606 = vrot.slane %v604, 1
        %v607 = vsel %vm547, %v602, %v606
        %v609 = vshrl.u32 %v472, 16
        %v611 = vshll.u32 %v472, 16
        %v613 = vrot.slane %v611, 1
        %v614 = vor.u32 %v609, %v613
        %v616 = vshll.u32 %v536, 16
        %v618 = vrot.slane %v616, 1
        %v619 = vsel %vm547, %v614, %v618
        %v621 = vshrl.u32 %v473, 16
        %v623 = vshll.u32 %v473, 16
        %v625 = vrot.slane %v623, 1
        %v626 = vor.u32 %v621, %v625
        %v628 = vshll.u32 %v537, 16
        %v630 = vrot.slane %v628, 1
        %v631 = vsel %vm547, %v626, %v630
        %v633 = vshrl.u32 %v474, 16
        %v635 = vshll.u32 %v474, 16
        %v637 = vrot.slane %v635, 1
        %v638 = vor.u32 %v633, %v637
        %v640 = vshll.u32 %v538, 16
        %v642 = vrot.slane %v640, 1
        %v643 = vsel %vm547, %v638, %v642
        %v645 = vshrl.u32 %v475, 16
        %v647 = vshll.u32 %v475, 16
        %v649 = vrot.slane %v647, 1
        %v650 = vor.u32 %v645, %v649
        %v652 = vshll.u32 %v539, 16
        %v654 = vrot.slane %v652, 1
        %v655 = vsel %vm547, %v650, %v654
        %v657 = vshrl.u32 %v476, 16
        %v659 = vshll.u32 %v476, 16
        %v661 = vrot.slane %v659, 1
        %v662 = vor.u32 %v657, %v661
        %v664 = vshll.u32 %v540, 16
        %v666 = vrot.slane %v664, 1
        %v667 = vsel %vm547, %v662, %v666
        %v669 = vshrl.u32 %v477, 16
        %v671 = vshll.u32 %v477, 16
        %v673 = vrot.slane %v671, 1
        %v674 = vor.u32 %v669, %v673
        %v676 = vshll.u32 %v541, 16
        %v678 = vrot.slane %v676, 1
        %v679 = vsel %vm547, %v674, %v678
        %v681 = vshrl.u32 %v478, 16
        %v683 = vshll.u32 %v478, 16
        %v685 = vrot.slane %v683, 1
        %v686 = vor.u32 %v681, %v685
        %v688 = vshll.u32 %v542, 16
        %v690 = vrot.slane %v688, 1
        %v691 = vsel %vm547, %v686, %v690
        %v693 = vshrl.u32 %v479, 16
        %v695 = vshll.u32 %v479, 16
        %v697 = vrot.slane %v695, 1
        %v698 = vor.u32 %v693, %v697
        %v700 = vshll.u32 %v543, 16
        %v702 = vrot.slane %v700, 1
        %v703 = vsel %vm547, %v698, %v702
        %v705 = vshrl.u32 %v480, 16
        %v707 = vshll.u32 %v480, 16
        %v709 = vrot.slane %v707, 1
        %v710 = vor.u32 %v705, %v709
        %v712 = vshll.u32 %v544, 16
        %v714 = vrot.slane %v712, 1
        %v715 = vsel %vm547, %v710, %v714
        %v717 = vshrl.u32 %v481, 16
        %v719 = vshll.u32 %v481, 16
        %v721 = vrot.slane %v719, 1
        %v722 = vor.u32 %v717, %v721
        %v724 = vshll.u32 %v545, 16
        %v726 = vrot.slane %v724, 1
        %v727 = vsel %vm547, %v722, %v726
        %v729 = vshrl.u32 %v482, 16
        %v731 = vshll.u32 %v482, 16
        %v733 = vrot.slane %v731, 1
        %v734 = vor.u32 %v729, %v733
        %v736 = vshll.u32 %v546, 16
        %v738 = vrot.slane %v736, 1
        %v739 = vsel %vm547, %v734, %v738
        %vm756 = vcmask 1046528
        %v757 = vrot.slane %v467, 1
        %v758 = vrot.slane %v531, 1
        %v759 = vsel %vm756, %v757, %v758
        %v760 = vrot.slane %v468, 1
        %v761 = vrot.slane %v532, 1
        %v762 = vsel %vm756, %v760, %v761
        %v763 = vrot.slane %v469, 1
        %v764 = vrot.slane %v533, 1
        %v765 = vsel %vm756, %v763, %v764
        %v766 = vrot.slane %v470, 1
        %v767 = vrot.slane %v534, 1
        %v768 = vsel %vm756, %v766, %v767
        %v769 = vrot.slane %v471, 1
        %v770 = vrot.slane %v535, 1
        %v771 = vsel %vm756, %v769, %v770
        %v772 = vrot.slane %v472, 1
        %v773 = vrot.slane %v536, 1
        %v774 = vsel %vm756, %v772, %v773
        %v775 = vrot.slane %v473, 1
        %v776 = vrot.slane %v537, 1
        %v777 = vsel %vm756, %v775, %v776
        %v778 = vrot.slane %v474, 1
        %v779 = vrot.slane %v538, 1
        %v780 = vsel %vm756, %v778, %v779
        %v781 = vrot.slane %v475, 1
        %v782 = vrot.slane %v539, 1
        %v783 = vsel %vm756, %v781, %v782
        %v784 = vrot.slane %v476, 1
        %v785 = vrot.slane %v540, 1
        %v786 = vsel %vm756, %v784, %v785
        %v787 = vrot.slane %v477, 1
        %v788 = vrot.slane %v541, 1
        %v789 = vsel %vm756, %v787, %v788
        %v790 = vrot.slane %v478, 1
        %v791 = vrot.slane %v542, 1
        %v792 = vsel %vm756, %v790, %v791
        %v793 = vrot.slane %v479, 1
        %v794 = vrot.slane %v543, 1
        %v795 = vsel %vm756, %v793, %v794
        %v796 = vrot.slane %v480, 1
        %v797 = vrot.slane %v544, 1
        %v798 = vsel %vm756, %v796, %v797
        %v799 = vrot.slane %v481, 1
        %v800 = vrot.slane %v545, 1
        %v801 = vsel %vm756, %v799, %v800
        %v802 = vrot.slane %v482, 1
        %v803 = vrot.slane %v546, 1
        %v804 = vsel %vm756, %v802, %v803
        %v821 = vld [vmem:[#allocation2] sm:$0xf]
        %v822 = vld [vmem:[#allocation2 + $0x4] sm:$0xf]
        %v823 = vld [vmem:[#allocation2 + $0x8] sm:$0xf]
        %v824 = vld [vmem:[#allocation2 + $0xc] sm:$0xf]
        %v825 = vld [vmem:[#allocation2 + $0x10] sm:$0xf]
        %v826 = vld [vmem:[#allocation2 + $0x14] sm:$0xf]
        %v827 = vld [vmem:[#allocation2 + $0x18] sm:$0xf]
        %v828 = vld [vmem:[#allocation2 + $0x1c] sm:$0xf]
        %v829 = vld [vmem:[#allocation2 + $0x20] sm:$0xf]
        %v830 = vld [vmem:[#allocation2 + $0x24] sm:$0xf]
        %v831 = vld [vmem:[#allocation2 + $0x28] sm:$0xf]
        %v832 = vld [vmem:[#allocation2 + $0x2c] sm:$0xf]
        %v833 = vld [vmem:[#allocation2 + $0x30] sm:$0xf]
        %v834 = vld [vmem:[#allocation2 + $0x34] sm:$0xf]
        %v835 = vld [vmem:[#allocation2 + $0x38] sm:$0xf]
        %v836 = vld [vmem:[#allocation2 + $0x3c] sm:$0xf]
        %v837 = vld [vmem:[#allocation2 + $0x40] sm:$0xf]
        %v838 = vld [vmem:[#allocation2 + $0x44] sm:$0xf]
        %v839 = vld [vmem:[#allocation2 + $0x48] sm:$0xf]
        %v840 = vld [vmem:[#allocation2 + $0x4c] sm:$0xf]
        %v841 = vld [vmem:[#allocation2 + $0x50] sm:$0xf]
        %v842 = vld [vmem:[#allocation2 + $0x54] sm:$0xf]
        %v843 = vld [vmem:[#allocation2 + $0x58] sm:$0xf]
        %v844 = vld [vmem:[#allocation2 + $0x5c] sm:$0xf]
        %v845 = vld [vmem:[#allocation2 + $0x60] sm:$0xf]
        %v846 = vld [vmem:[#allocation2 + $0x64] sm:$0xf]
        %v847 = vld [vmem:[#allocation2 + $0x68] sm:$0xf]
        %v848 = vld [vmem:[#allocation2 + $0x6c] sm:$0xf]
        %v849 = vld [vmem:[#allocation2 + $0x70] sm:$0xf]
        %v850 = vld [vmem:[#allocation2 + $0x74] sm:$0xf]
        %v851 = vld [vmem:[#allocation2 + $0x78] sm:$0xf]
        %v852 = vld [vmem:[#allocation2 + $0x7c] sm:$0xf]
        %v853 = vld [vmem:[#allocation2 + $0x80] sm:$0xf]
        %v854 = vld [vmem:[#allocation2 + $0x84] sm:$0xf]
        %v855 = vld [vmem:[#allocation2 + $0x88] sm:$0xf]
        %v856 = vld [vmem:[#allocation2 + $0x8c] sm:$0xf]
        %v857 = vld [vmem:[#allocation2 + $0x90] sm:$0xf]
        %v858 = vld [vmem:[#allocation2 + $0x94] sm:$0xf]
        %v859 = vld [vmem:[#allocation2 + $0x98] sm:$0xf]
        %v860 = vld [vmem:[#allocation2 + $0x9c] sm:$0xf]
        %v861 = vld [vmem:[#allocation2 + $0xa0] sm:$0xf]
        %v862 = vld [vmem:[#allocation2 + $0xa4] sm:$0xf]
        %v863 = vld [vmem:[#allocation2 + $0xa8] sm:$0xf]
        %v864 = vld [vmem:[#allocation2 + $0xac] sm:$0xf]
        %v865 = vld [vmem:[#allocation2 + $0xb0] sm:$0xf]
        %v866 = vld [vmem:[#allocation2 + $0xb4] sm:$0xf]
        %v867 = vld [vmem:[#allocation2 + $0xb8] sm:$0xf]
        %v868 = vld [vmem:[#allocation2 + $0xbc] sm:$0xf]
        %v871 = vunpack.c.l.b16 %v397
        %v872 = vunpack.c.l.b16 %v398
        %v873 = vpack.c.b16 %v872, %v871
        %v876 = vunpack.c.l.b16 %v399
        %v877 = vpack.c.b16 %v876, %v876
        %v879 = vshrl.u32 %v873, 16
        %v881 = vshll.u32 %v873, 16
        %v883 = vrot.slane %v881, 1
        %v884 = vor.u32 %v879, %v883
        %v886 = vshll.u32 %v877, 16
        %v888 = vrot.slane %v886, 1
        %v889 = vsel %vm547, %v884, %v888
        %v891 = vrot.slane %v873, 1
        %v892 = vrot.slane %v877, 1
        %v893 = vsel %vm756, %v891, %v892
        %s895 = scalar_lea.vmem [#allocation2], 192
        %v896 = vld [vmem:[%s895] sm:$0xf]
        %v897 = vld [vmem:[%s895 + $0x4] sm:$0xf]
        %v898 = vld [vmem:[%s895 + $0x8] sm:$0xf]
        %v899 = vld [vmem:[%s895 + $0xc] sm:$0xf]
        %v900 = vld [vmem:[%s895 + $0x10] sm:$0xf]
        %v901 = vld [vmem:[%s895 + $0x14] sm:$0xf]
        %v902 = vld [vmem:[%s895 + $0x18] sm:$0xf]
        %v903 = vld [vmem:[%s895 + $0x1c] sm:$0xf]
        %v904 = vld [vmem:[%s895 + $0x20] sm:$0xf]
        %v905 = vld [vmem:[%s895 + $0x24] sm:$0xf]
        %v906 = vld [vmem:[%s895 + $0x28] sm:$0xf]
        %v907 = vld [vmem:[%s895 + $0x2c] sm:$0xf]
        %v908 = vld [vmem:[%s895 + $0x30] sm:$0xf]
        %v909 = vld [vmem:[%s895 + $0x34] sm:$0xf]
        %v910 = vld [vmem:[%s895 + $0x38] sm:$0xf]
        %v911 = vld [vmem:[%s895 + $0x3c] sm:$0xf]
        %v912 = vld [vmem:[%s895 + $0x40] sm:$0xf]
        %v913 = vld [vmem:[%s895 + $0x44] sm:$0xf]
        %v914 = vld [vmem:[%s895 + $0x48] sm:$0xf]
        %v915 = vld [vmem:[%s895 + $0x4c] sm:$0xf]
        %v916 = vld [vmem:[%s895 + $0x50] sm:$0xf]
        %v917 = vld [vmem:[%s895 + $0x54] sm:$0xf]
        %v918 = vld [vmem:[%s895 + $0x58] sm:$0xf]
        %v919 = vld [vmem:[%s895 + $0x5c] sm:$0xf]
        %v920 = vld [vmem:[%s895 + $0x60] sm:$0xf]
        %v921 = vld [vmem:[%s895 + $0x64] sm:$0xf]
        %v922 = vld [vmem:[%s895 + $0x68] sm:$0xf]
        %v923 = vld [vmem:[%s895 + $0x6c] sm:$0xf]
        %v924 = vld [vmem:[%s895 + $0x70] sm:$0xf]
        %v925 = vld [vmem:[%s895 + $0x74] sm:$0xf]
        %v926 = vld [vmem:[%s895 + $0x78] sm:$0xf]
        %v927 = vld [vmem:[%s895 + $0x7c] sm:$0xf]
        %v928 = vld [vmem:[%s895 + $0x80] sm:$0xf]
        %v929 = vld [vmem:[%s895 + $0x84] sm:$0xf]
        %v930 = vld [vmem:[%s895 + $0x88] sm:$0xf]
        %v931 = vld [vmem:[%s895 + $0x8c] sm:$0xf]
        %v932 = vld [vmem:[%s895 + $0x90] sm:$0xf]
        %v933 = vld [vmem:[%s895 + $0x94] sm:$0xf]
        %v934 = vld [vmem:[%s895 + $0x98] sm:$0xf]
        %v935 = vld [vmem:[%s895 + $0x9c] sm:$0xf]
        %v936 = vld [vmem:[%s895 + $0xa0] sm:$0xf]
        %v937 = vld [vmem:[%s895 + $0xa4] sm:$0xf]
        %v938 = vld [vmem:[%s895 + $0xa8] sm:$0xf]
        %v939 = vld [vmem:[%s895 + $0xac] sm:$0xf]
        %v940 = vld [vmem:[%s895 + $0xb0] sm:$0xf]
        %v941 = vld [vmem:[%s895 + $0xb4] sm:$0xf]
        %v942 = vld [vmem:[%s895 + $0xb8] sm:$0xf]
        %v943 = vld [vmem:[%s895 + $0xbc] sm:$0xf]
        %v992 = vunpack.c.l.b16 %v896
        %v993 = vunpack.c.l.b16 %v897
        %v994 = vunpack.c.l.b16 %v898
        %v995 = vunpack.c.l.b16 %v899
        %v996 = vunpack.c.l.b16 %v900
        %v997 = vunpack.c.l.b16 %v901
        %v998 = vunpack.c.l.b16 %v902
        %v999 = vunpack.c.l.b16 %v903
        %v1000 = vunpack.c.l.b16 %v904
        %v1001 = vunpack.c.l.b16 %v905
        %v1002 = vunpack.c.l.b16 %v906
        %v1003 = vunpack.c.l.b16 %v907
        %v1004 = vunpack.c.l.b16 %v908
        %v1005 = vunpack.c.l.b16 %v909
        %v1006 = vunpack.c.l.b16 %v910
        %v1007 = vunpack.c.l.b16 %v911
        %v1008 = vunpack.c.l.b16 %v912
        %v1009 = vunpack.c.l.b16 %v913
        %v1010 = vunpack.c.l.b16 %v914
        %v1011 = vunpack.c.l.b16 %v915
        %v1012 = vunpack.c.l.b16 %v916
        %v1013 = vunpack.c.l.b16 %v917
        %v1014 = vunpack.c.l.b16 %v918
        %v1015 = vunpack.c.l.b16 %v919
        %v1016 = vunpack.c.l.b16 %v920
        %v1017 = vunpack.c.l.b16 %v921
        %v1018 = vunpack.c.l.b16 %v922
        %v1019 = vunpack.c.l.b16 %v923
        %v1020 = vunpack.c.l.b16 %v924
        %v1021 = vunpack.c.l.b16 %v925
        %v1022 = vunpack.c.l.b16 %v926
        %v1023 = vunpack.c.l.b16 %v927
        %v1024 = vunpack.c.l.b16 %v928
        %v1025 = vunpack.c.l.b16 %v929
        %v1026 = vunpack.c.l.b16 %v930
        %v1027 = vunpack.c.l.b16 %v931
        %v1028 = vunpack.c.l.b16 %v932
        %v1029 = vunpack.c.l.b16 %v933
        %v1030 = vunpack.c.l.b16 %v934
        %v1031 = vunpack.c.l.b16 %v935
        %v1032 = vunpack.c.l.b16 %v936
        %v1033 = vunpack.c.l.b16 %v937
        %v1034 = vunpack.c.l.b16 %v938
        %v1035 = vunpack.c.l.b16 %v939
        %v1036 = vunpack.c.l.b16 %v940
        %v1037 = vunpack.c.l.b16 %v941
        %v1038 = vunpack.c.l.b16 %v942
        %v1039 = vunpack.c.l.b16 %v943
        %v1040 = vpack.c.b16 %v993, %v992
        %v1041 = vpack.c.b16 %v995, %v994
        %v1042 = vpack.c.b16 %v997, %v996
        %v1043 = vpack.c.b16 %v999, %v998
        %v1044 = vpack.c.b16 %v1001, %v1000
        %v1045 = vpack.c.b16 %v1003, %v1002
        %v1046 = vpack.c.b16 %v1005, %v1004
        %v1047 = vpack.c.b16 %v1007, %v1006
        %v1048 = vpack.c.b16 %v1009, %v1008
        %v1049 = vpack.c.b16 %v1011, %v1010
        %v1050 = vpack.c.b16 %v1013, %v1012
        %v1051 = vpack.c.b16 %v1015, %v1014
        %v1052 = vpack.c.b16 %v1017, %v1016
        %v1053 = vpack.c.b16 %v1019, %v1018
        %v1054 = vpack.c.b16 %v1021, %v1020
        %v1055 = vpack.c.b16 %v1023, %v1022
        %v1056 = vpack.c.b16 %v1025, %v1024
        %v1057 = vpack.c.b16 %v1027, %v1026
        %v1058 = vpack.c.b16 %v1029, %v1028
        %v1059 = vpack.c.b16 %v1031, %v1030
        %v1060 = vpack.c.b16 %v1033, %v1032
        %v1061 = vpack.c.b16 %v1035, %v1034
        %v1062 = vpack.c.b16 %v1037, %v1036
        %v1063 = vpack.c.b16 %v1039, %v1038
        %1088 = vmatprep.subr.bf16.mxu0 0
        %1089 = vmatpush1.bf16.msra.mxu0 %v1040
        %1090 = vmatprep.subr.bf16.mxu0 0
        %1091 = vmatpush1.bf16.msra.mxu0 %v1041
        %1092 = vmatprep.subr.bf16.mxu0 0
        %1093 = vmatpush1.bf16.msra.mxu0 %v1042
        %1094 = vmatprep.subr.bf16.mxu0 0
        %1095 = vmatpush1.bf16.msra.mxu0 %v1043
        %1096 = vmatprep.subr.bf16.mxu0 0
        %1097 = vmatpush1.bf16.msra.mxu0 %v1044
        %1098 = vmatprep.subr.bf16.mxu0 0
        %1099 = vmatpush1.bf16.msra.mxu0 %v1045
        %1100 = vmatprep.subr.bf16.mxu0 0
        %1101 = vmatpush1.bf16.msra.mxu0 %v1046
        %1102 = vmatprep.subr.bf16.mxu0 0
        %1103 = vmatpush1.bf16.msra.mxu0 %v1047
        %1104 = vmatprep.subr.bf16.mxu0 0
        %1105 = vmatpush1.bf16.msra.mxu0 %v1048
        %1106 = vmatprep.subr.bf16.mxu0 0
        %1107 = vmatpush1.bf16.msra.mxu0 %v1049
        %1108 = vmatprep.subr.bf16.mxu0 0
        %1109 = vmatpush1.bf16.msra.mxu0 %v1050
        %1110 = vmatprep.subr.bf16.mxu0 0
        %1111 = vmatpush1.bf16.msra.mxu0 %v1051
        %1112 = vmatprep.subr.bf16.mxu0 0
        %1113 = vmatpush1.bf16.msra.mxu0 %v1052
        %1114 = vmatprep.subr.bf16.mxu0 0
        %1115 = vmatpush1.bf16.msra.mxu0 %v1053
        %1116 = vmatprep.subr.bf16.mxu0 0
        %1117 = vmatpush1.bf16.msra.mxu0 %v1054
        %1118 = vmatprep.subr.bf16.mxu0 0
        %1119 = vmatpush1.bf16.msra.mxu0 %v1055
        %1120 = vmatprep.mubr.bf16.mxu0 %v571
        %1121 = vmatmul.mubr.bf16.gmra.mrb[0].mxu0 %v468
        %v1122 = vpop.f32.mrb[0].mxu0
        %v1123 = vadd.f32 0.0, %v1122
        %v1124 = vpop.f32.mrb[0].mxu0
        %v1125 = vpop.f32.mrb[0].mxu0
        %v1126 = vadd.f32 0.0, %v1125
        %v1127 = vpop.f32.mrb[0].mxu0
        %1128 = vmatprep.mubr.bf16.mxu0 %v583
        %1129 = vmatmul.mubr.bf16.gmra.mrb[0].mxu0 %v469
        %v1130 = vpop.f32.mrb[0].mxu0
        %v1131 = vadd.f32 0.0, %v1130
        %v1132 = vpop.f32.mrb[0].mxu0
        %v1133 = vpop.f32.mrb[0].mxu0
        %v1134 = vadd.f32 0.0, %v1133
        %v1135 = vpop.f32.mrb[0].mxu0
        %1136 = vmatprep.mubr.bf16.mxu0 %v595
        %1137 = vmatmul.mubr.bf16.gmra.mrb[0].mxu0 %v470
        %v1138 = vpop.f32.mrb[0].mxu0
        %v1139 = vadd.f32 0.0, %v1138
        %v1140 = vpop.f32.mrb[0].mxu0
        %v1141 = vpop.f32.mrb[0].mxu0
        %v1142 = vadd.f32 0.0, %v1141
        %v1143 = vpop.f32.mrb[0].mxu0
        %1144 = vmatprep.mubr.bf16.mxu0 %v607
        %1145 = vmatmul.mubr.bf16.gmra.mrb[0].mxu0 %v471
        %v1146 = vpop.f32.mrb[0].mxu0
        %v1147 = vadd.f32 0.0, %v1146
        %v1148 = vpop.f32.mrb[0].mxu0
        %v1149 = vpop.f32.mrb[0].mxu0
        %v1150 = vadd.f32 0.0, %v1149
        %v1151 = vpop.f32.mrb[0].mxu0
        %1152 = vmatprep.mubr.bf16.mxu0 %v619
        %1153 = vmatmul.mubr.bf16.gmra.mrb[0].mxu0 %v472
        %v1154 = vpop.f32.mrb[0].mxu0
        %v1155 = vadd.f32 0.0, %v1154
        %v1156 = vpop.f32.mrb[0].mxu0
        %v1157 = vpop.f32.mrb[0].mxu0
        %v1158 = vadd.f32 0.0, %v1157
        %v1159 = vpop.f32.mrb[0].mxu0
        %1160 = vmatprep.mubr.bf16.mxu0 %v631
        %1161 = vmatmul.mubr.bf16.gmra.mrb[0].mxu0 %v473
        %v1162 = vpop.f32.mrb[0].mxu0
        %v1163 = vadd.f32 0.0, %v1162
        %v1164 = vpop.f32.mrb[0].mxu0
        %v1165 = vpop.f32.mrb[0].mxu0
        %v1166 = vadd.f32 0.0, %v1165
        %v1167 = vpop.f32.mrb[0].mxu0
        %1168 = vmatprep.mubr.bf16.mxu0 %v643
        %1169 = vmatmul.mubr.bf16.gmra.mrb[0].mxu0 %v474
        %v1170 = vpop.f32.mrb[0].mxu0
        %v1171 = vadd.f32 0.0, %v1170
        %v1172 = vpop.f32.mrb[0].mxu0
        %v1173 = vpop.f32.mrb[0].mxu0
        %v1174 = vadd.f32 0.0, %v1173
        %v1175 = vpop.f32.mrb[0].mxu0
        %1176 = vmatprep.mubr.bf16.mxu0 %v655
        %1177 = vmatmul.mubr.bf16.gmra.mrb[0].mxu0 %v475
        %v1178 = vpop.f32.mrb[0].mxu0
        %v1179 = vadd.f32 0.0, %v1178
        %v1180 = vpop.f32.mrb[0].mxu0
        %v1181 = vpop.f32.mrb[0].mxu0
        %v1182 = vadd.f32 0.0, %v1181
        %v1183 = vpop.f32.mrb[0].mxu0
        %1184 = vmatprep.mubr.bf16.mxu0 %v667
        %1185 = vmatmul.mubr.bf16.gmra.mrb[0].mxu0 %v476
        %v1186 = vpop.f32.mrb[0].mxu0
        %v1187 = vadd.f32 0.0, %v1186
        %v1188 = vpop.f32.mrb[0].mxu0
        %v1189 = vpop.f32.mrb[0].mxu0
        %v1190 = vadd.f32 0.0, %v1189
        %v1191 = vpop.f32.mrb[0].mxu0
        %1192 = vmatprep.mubr.bf16.mxu0 %v679
        %1193 = vmatmul.mubr.bf16.gmra.mrb[0].mxu0 %v477
        %v1194 = vpop.f32.mrb[0].mxu0
        %v1195 = vadd.f32 0.0, %v1194
        %v1196 = vpop.f32.mrb[0].mxu0
        %v1197 = vpop.f32.mrb[0].mxu0
        %v1198 = vadd.f32 0.0, %v1197
        %v1199 = vpop.f32.mrb[0].mxu0
        %1200 = vmatprep.mubr.bf16.mxu0 %v691
        %1201 = vmatmul.mubr.bf16.gmra.mrb[0].mxu0 %v478
        %v1202 = vpop.f32.mrb[0].mxu0
        %v1203 = vadd.f32 0.0, %v1202
        %v1204 = vpop.f32.mrb[0].mxu0
        %v1205 = vpop.f32.mrb[0].mxu0
        %v1206 = vadd.f32 0.0, %v1205
        %v1207 = vpop.f32.mrb[0].mxu0
        %1208 = vmatprep.mubr.bf16.mxu0 %v703
        %1209 = vmatmul.mubr.bf16.gmra.mrb[0].mxu0 %v479
        %v1210 = vpop.f32.mrb[0].mxu0
        %v1211 = vadd.f32 0.0, %v1210
        %v1212 = vpop.f32.mrb[0].mxu0
        %v1213 = vpop.f32.mrb[0].mxu0
        %v1214 = vadd.f32 0.0, %v1213
        %v1215 = vpop.f32.mrb[0].mxu0
        %1216 = vmatprep.mubr.bf16.mxu0 %v715
        %1217 = vmatmul.mubr.bf16.gmra.mrb[0].mxu0 %v480
        %v1218 = vpop.f32.mrb[0].mxu0
        %v1219 = vadd.f32 0.0, %v1218
        %v1220 = vpop.f32.mrb[0].mxu0
        %v1221 = vpop.f32.mrb[0].mxu0
        %v1222 = vadd.f32 0.0, %v1221
        %v1223 = vpop.f32.mrb[0].mxu0
        %1224 = vmatprep.mubr.bf16.mxu0 %v727
        %1225 = vmatmul.mubr.bf16.gmra.mrb[0].mxu0 %v481
        %v1226 = vpop.f32.mrb[0].mxu0
        %v1227 = vadd.f32 0.0, %v1226
        %v1228 = vpop.f32.mrb[0].mxu0
        %v1229 = vpop.f32.mrb[0].mxu0
        %v1230 = vadd.f32 0.0, %v1229
        %v1231 = vpop.f32.mrb[0].mxu0
        %1232 = vmatprep.mubr.bf16.mxu0 %v739
        %1233 = vmatmul.mubr.bf16.gmra.mrb[0].mxu0 %v482
        %v1234 = vpop.f32.mrb[0].mxu0
        %v1235 = vadd.f32 0.0, %v1234
        %v1236 = vpop.f32.mrb[0].mxu0
        %v1237 = vpop.f32.mrb[0].mxu0
        %v1238 = vadd.f32 0.0, %v1237
        %v1239 = vpop.f32.mrb[0].mxu0
        %1240 = vmatprep.mubr.bf16.mxu0 %v889
        %1241 = vmatmul.mubr.bf16.gmra.mrb[0].mxu0 %v873
        %v1242 = vpop.f32.mrb[0].mxu0
        %v1243 = vadd.f32 0.0, %v1242
        %v1244 = vpop.f32.mrb[0].mxu0
        %v1245 = vpop.f32.mrb[0].mxu0
        %v1246 = vadd.f32 0.0, %v1245
        %v1247 = vpop.f32.mrb[0].mxu0
        %1248 = vdwg.mxu0
        %1249 = vmatprep.subr.bf16.mxu0 0
        %1250 = vmatpush1.bf16.msra.mxu0 %v1056
        %1251 = vmatprep.subr.bf16.mxu0 0
        %1252 = vmatpush1.bf16.msra.mxu0 %v1057
        %1253 = vmatprep.subr.bf16.mxu0 0
        %1254 = vmatpush1.bf16.msra.mxu0 %v1058
        %1255 = vmatprep.subr.bf16.mxu0 0
        %1256 = vmatpush1.bf16.msra.mxu0 %v1059
        %1257 = vmatprep.subr.bf16.mxu0 0
        %1258 = vmatpush1.bf16.msra.mxu0 %v1060
        %1259 = vmatprep.subr.bf16.mxu0 0
        %1260 = vmatpush1.bf16.msra.mxu0 %v1061
        %1261 = vmatprep.subr.bf16.mxu0 0
        %1262 = vmatpush1.bf16.msra.mxu0 %v1062
        %1263 = vmatprep.subr.bf16.mxu0 0
        %1264 = vmatpush1.bf16.msra.mxu0 %v1063
        %1265 = vmatprep.subr.bf16.mxu0 0
        %1266 = vmatpush1.bf16.msra.mxu0 0
        %1267 = vmatprep.subr.bf16.mxu0 0
        %1268 = vmatpush1.bf16.msra.mxu0 0
        %1269 = vmatprep.subr.bf16.mxu0 0
        %1270 = vmatpush1.bf16.msra.mxu0 0
        %1271 = vmatprep.subr.bf16.mxu0 0
        %1272 = vmatpush1.bf16.msra.mxu0 0
        %1273 = vmatprep.subr.bf16.mxu0 0
        %1274 = vmatpush1.bf16.msra.mxu0 0
        %1275 = vmatprep.subr.bf16.mxu0 0
        %1276 = vmatpush1.bf16.msra.mxu0 0
        %1277 = vmatprep.subr.bf16.mxu0 0
        %1278 = vmatpush1.bf16.msra.mxu0 0
        %1279 = vmatprep.subr.bf16.mxu0 0
        %1280 = vmatpush1.bf16.msra.mxu0 0
        %1281 = vmatprep.mubr.bf16.mxu0 0
        %1282 = vmatmul.mubr.bf16.gmra.mrb[0].mxu0 %v762
        %v1283 = vpop.f32.mrb[0].mxu0
        %v1284 = vadd.f32 %v1123, %v1283
        %v1285 = vpop.f32.mrb[0].mxu0
        %v1286 = vpop.f32.mrb[0].mxu0
        %v1287 = vadd.f32 %v1126, %v1286
        %v1288 = vpop.f32.mrb[0].mxu0
        %1289 = vmatprep.mubr.bf16.mxu0 0
        %1290 = vmatmul.mubr.bf16.gmra.mrb[0].mxu0 %v765
        %v1291 = vpop.f32.mrb[0].mxu0
        %v1292 = vadd.f32 %v1131, %v1291
        %v1293 = vpop.f32.mrb[0].mxu0
        %v1294 = vpop.f32.mrb[0].mxu0
        %v1295 = vadd.f32 %v1134, %v1294
        %v1296 = vpop.f32.mrb[0].mxu0
        %1297 = vmatprep.mubr.bf16.mxu0 0
        %1298 = vmatmul.mubr.bf16.gmra.mrb[0].mxu0 %v768
        %v1299 = vpop.f32.mrb[0].mxu0
        %v1300 = vadd.f32 %v1139, %v1299
        %v1301 = vpop.f32.mrb[0].mxu0
        %v1302 = vpop.f32.mrb[0].mxu0
        %v1303 = vadd.f32 %v1142, %v1302
        %v1304 = vpop.f32.mrb[0].mxu0
        %1305 = vmatprep.mubr.bf16.mxu0 0
        %1306 = vmatmul.mubr.bf16.gmra.mrb[0].mxu0 %v771
        %v1307 = vpop.f32.mrb[0].mxu0
        %v1308 = vadd.f32 %v1147, %v1307
        %v1309 = vpop.f32.mrb[0].mxu0
        %v1310 = vpop.f32.mrb[0].mxu0
        %v1311 = vadd.f32 %v1150, %v1310
        %v1312 = vpop.f32.mrb[0].mxu0
        %1313 = vmatprep.mubr.bf16.mxu0 0
        %1314 = vmatmul.mubr.bf16.gmra.mrb[0].mxu0 %v774
        %v1315 = vpop.f32.mrb[0].mxu0
        %v1316 = vadd.f32 %v1155, %v1315
        %v1317 = vpop.f32.mrb[0].mxu0
        %v1318 = vpop.f32.mrb[0].mxu0
        %v1319 = vadd.f32 %v1158, %v1318
        %v1320 = vpop.f32.mrb[0].mxu0
        %1321 = vmatprep.mubr.bf16.mxu0 0
        %1322 = vmatmul.mubr.bf16.gmra.mrb[0].mxu0 %v777
        %v1323 = vpop.f32.mrb[0].mxu0
        %v1324 = vadd.f32 %v1163, %v1323
        %v1325 = vpop.f32.mrb[0].mxu0
        %v1326 = vpop.f32.mrb[0].mxu0
        %v1327 = vadd.f32 %v1166, %v1326
        %v1328 = vpop.f32.mrb[0].mxu0
        %1329 = vmatprep.mubr.bf16.mxu0 0
        %1330 = vmatmul.mubr.bf16.gmra.mrb[0].mxu0 %v780
        %v1331 = vpop.f32.mrb[0].mxu0
        %v1332 = vadd.f32 %v1171, %v1331
        %v1333 = vpop.f32.mrb[0].mxu0
        %v1334 = vpop.f32.mrb[0].mxu0
        %v1335 = vadd.f32 %v1174, %v1334
        %v1336 = vpop.f32.mrb[0].mxu0
        %1337 = vmatprep.mubr.bf16.mxu0 0
        %1338 = vmatmul.mubr.bf16.gmra.mrb[0].mxu0 %v783
        %v1339 = vpop.f32.mrb[0].mxu0
        %v1340 = vadd.f32 %v1179, %v1339
        %v1341 = vpop.f32.mrb[0].mxu0
        %v1342 = vpop.f32.mrb[0].mxu0
        %v1343 = vadd.f32 %v1182, %v1342
        %v1344 = vpop.f32.mrb[0].mxu0
        %1345 = vmatprep.mubr.bf16.mxu0 0
        %1346 = vmatmul.mubr.bf16.gmra.mrb[0].mxu0 %v786
        %v1347 = vpop.f32.mrb[0].mxu0
        %v1348 = vadd.f32 %v1187, %v1347
        %v1349 = vpop.f32.mrb[0].mxu0
        %v1350 = vpop.f32.mrb[0].mxu0
        %v1351 = vadd.f32 %v1190, %v1350
        %v1352 = vpop.f32.mrb[0].mxu0
        %1353 = vmatprep.mubr.bf16.mxu0 0
        %1354 = vmatmul.mubr.bf16.gmra.mrb[0].mxu0 %v789
        %v1355 = vpop.f32.mrb[0].mxu0
        %v1356 = vadd.f32 %v1195, %v1355
        %v1357 = vpop.f32.mrb[0].mxu0
        %v1358 = vpop.f32.mrb[0].mxu0
        %v1359 = vadd.f32 %v1198, %v1358
        %v1360 = vpop.f32.mrb[0].mxu0
        %1361 = vmatprep.mubr.bf16.mxu0 0
        %1362 = vmatmul.mubr.bf16.gmra.mrb[0].mxu0 %v792
        %v1363 = vpop.f32.mrb[0].mxu0
        %v1364 = vadd.f32 %v1203, %v1363
        %v1365 = vpop.f32.mrb[0].mxu0
        %v1366 = vpop.f32.mrb[0].mxu0
        %v1367 = vadd.f32 %v1206, %v1366
        %v1368 = vpop.f32.mrb[0].mxu0
        %1369 = vmatprep.mubr.bf16.mxu0 0
        %1370 = vmatmul.mubr.bf16.gmra.mrb[0].mxu0 %v795
        %v1371 = vpop.f32.mrb[0].mxu0
        %v1372 = vadd.f32 %v1211, %v1371
        %v1373 = vpop.f32.mrb[0].mxu0
        %v1374 = vpop.f32.mrb[0].mxu0
        %v1375 = vadd.f32 %v1214, %v1374
        %v1376 = vpop.f32.mrb[0].mxu0
        %1377 = vmatprep.mubr.bf16.mxu0 0
        %1378 = vmatmul.mubr.bf16.gmra.mrb[0].mxu0 %v798
        %v1379 = vpop.f32.mrb[0].mxu0
        %v1380 = vadd.f32 %v1219, %v1379
        %v1381 = vpop.f32.mrb[0].mxu0
        %v1382 = vpop.f32.mrb[0].mxu0
        %v1383 = vadd.f32 %v1222, %v1382
        %v1384 = vpop.f32.mrb[0].mxu0
        %1385 = vmatprep.mubr.bf16.mxu0 0
        %1386 = vmatmul.mubr.bf16.gmra.mrb[0].mxu0 %v801
        %v1387 = vpop.f32.mrb[0].mxu0
        %v1388 = vadd.f32 %v1227, %v1387
        %v1389 = vpop.f32.mrb[0].mxu0
        %v1390 = vpop.f32.mrb[0].mxu0
        %v1391 = vadd.f32 %v1230, %v1390
        %v1392 = vpop.f32.mrb[0].mxu0
        %1393 = vmatprep.mubr.bf16.mxu0 0
        %1394 = vmatmul.mubr.bf16.gmra.mrb[0].mxu0 %v804
        %v1395 = vpop.f32.mrb[0].mxu0
        %v1396 = vadd.f32 %v1235, %v1395
        %v1397 = vpop.f32.mrb[0].mxu0
        %v1398 = vpop.f32.mrb[0].mxu0
        %v1399 = vadd.f32 %v1238, %v1398
        %v1400 = vpop.f32.mrb[0].mxu0
        %1401 = vmatprep.mubr.bf16.mxu0 0
        %1402 = vmatmul.mubr.bf16.gmra.mrb[0].mxu0 %v893
        %v1403 = vpop.f32.mrb[0].mxu0
        %v1404 = vadd.f32 %v1243, %v1403
        %v1405 = vpop.f32.mrb[0].mxu0
        %v1406 = vpop.f32.mrb[0].mxu0
        %v1407 = vadd.f32 %v1246, %v1406
        %v1408 = vpop.f32.mrb[0].mxu0
        %1409 = vdwg.mxu0
        %v1458 = vunpack.c.l.b16 %v821
        %v1459 = vunpack.c.l.b16 %v822
        %v1460 = vunpack.c.l.b16 %v823
        %v1461 = vunpack.c.l.b16 %v824
        %v1462 = vunpack.c.l.b16 %v825
        %v1463 = vunpack.c.l.b16 %v826
        %v1464 = vunpack.c.l.b16 %v827
        %v1465 = vunpack.c.l.b16 %v828
        %v1466 = vunpack.c.l.b16 %v829
        %v1467 = vunpack.c.l.b16 %v830
        %v1468 = vunpack.c.l.b16 %v831
        %v1469 = vunpack.c.l.b16 %v832
        %v1470 = vunpack.c.l.b16 %v833
        %v1471 = vunpack.c.l.b16 %v834
        %v1472 = vunpack.c.l.b16 %v835
        %v1473 = vunpack.c.l.b16 %v836
        %v1474 = vunpack.c.l.b16 %v837
        %v1475 = vunpack.c.l.b16 %v838
        %v1476 = vunpack.c.l.b16 %v839
        %v1477 = vunpack.c.l.b16 %v840
        %v1478 = vunpack.c.l.b16 %v841
        %v1479 = vunpack.c.l.b16 %v842
        %v1480 = vunpack.c.l.b16 %v843
        %v1481 = vunpack.c.l.b16 %v844
        %v1482 = vunpack.c.l.b16 %v845
        %v1483 = vunpack.c.l.b16 %v846
        %v1484 = vunpack.c.l.b16 %v847
        %v1485 = vunpack.c.l.b16 %v848
        %v1486 = vunpack.c.l.b16 %v849
        %v1487 = vunpack.c.l.b16 %v850
        %v1488 = vunpack.c.l.b16 %v851
        %v1489 = vunpack.c.l.b16 %v852
        %v1490 = vunpack.c.l.b16 %v853
        %v1491 = vunpack.c.l.b16 %v854
        %v1492 = vunpack.c.l.b16 %v855
        %v1493 = vunpack.c.l.b16 %v856
        %v1494 = vunpack.c.l.b16 %v857
        %v1495 = vunpack.c.l.b16 %v858
        %v1496 = vunpack.c.l.b16 %v859
        %v1497 = vunpack.c.l.b16 %v860
        %v1498 = vunpack.c.l.b16 %v861
        %v1499 = vunpack.c.l.b16 %v862
        %v1500 = vunpack.c.l.b16 %v863
        %v1501 = vunpack.c.l.b16 %v864
        %v1502 = vunpack.c.l.b16 %v865
        %v1503 = vunpack.c.l.b16 %v866
        %v1504 = vunpack.c.l.b16 %v867
        %v1505 = vunpack.c.l.b16 %v868
        %v1506 = vpack.c.b16 %v1459, %v1458
        %v1507 = vpack.c.b16 %v1461, %v1460
        %v1508 = vpack.c.b16 %v1463, %v1462
        %v1509 = vpack.c.b16 %v1465, %v1464
        %v1510 = vpack.c.b16 %v1467, %v1466
        %v1511 = vpack.c.b16 %v1469, %v1468
        %v1512 = vpack.c.b16 %v1471, %v1470
        %v1513 = vpack.c.b16 %v1473, %v1472
        %v1514 = vpack.c.b16 %v1475, %v1474
        %v1515 = vpack.c.b16 %v1477, %v1476
        %v1516 = vpack.c.b16 %v1479, %v1478
        %v1517 = vpack.c.b16 %v1481, %v1480
        %v1518 = vpack.c.b16 %v1483, %v1482
        %v1519 = vpack.c.b16 %v1485, %v1484
        %v1520 = vpack.c.b16 %v1487, %v1486
        %v1521 = vpack.c.b16 %v1489, %v1488
        %v1522 = vpack.c.b16 %v1491, %v1490
        %v1523 = vpack.c.b16 %v1493, %v1492
        %v1524 = vpack.c.b16 %v1495, %v1494
        %v1525 = vpack.c.b16 %v1497, %v1496
        %v1526 = vpack.c.b16 %v1499, %v1498
        %v1527 = vpack.c.b16 %v1501, %v1500
        %v1528 = vpack.c.b16 %v1503, %v1502
        %v1529 = vpack.c.b16 %v1505, %v1504
        %1554 = vmatprep.subr.bf16.mxu0 0
        %1555 = vmatpush1.bf16.msra.mxu0 %v1506
        %1556 = vmatprep.subr.bf16.mxu0 0
        %1557 = vmatpush1.bf16.msra.mxu0 %v1507
        %1558 = vmatprep.subr.bf16.mxu0 0
        %1559 = vmatpush1.bf16.msra.mxu0 %v1508
        %1560 = vmatprep.subr.bf16.mxu0 0
        %1561 = vmatpush1.bf16.msra.mxu0 %v1509
        %1562 = vmatprep.subr.bf16.mxu0 0
        %1563 = vmatpush1.bf16.msra.mxu0 %v1510
        %1564 = vmatprep.subr.bf16.mxu0 0
        %1565 = vmatpush1.bf16.msra.mxu0 %v1511
        %1566 = vmatprep.subr.bf16.mxu0 0
        %1567 = vmatpush1.bf16.msra.mxu0 %v1512
        %1568 = vmatprep.subr.bf16.mxu0 0
        %1569 = vmatpush1.bf16.msra.mxu0 %v1513
        %1570 = vmatprep.subr.bf16.mxu0 0
        %1571 = vmatpush1.bf16.msra.mxu0 %v1514
        %1572 = vmatprep.subr.bf16.mxu0 0
        %1573 = vmatpush1.bf16.msra.mxu0 %v1515
        %1574 = vmatprep.subr.bf16.mxu0 0
        %1575 = vmatpush1.bf16.msra.mxu0 %v1516
        %1576 = vmatprep.subr.bf16.mxu0 0
        %1577 = vmatpush1.bf16.msra.mxu0 %v1517
        %1578 = vmatprep.subr.bf16.mxu0 0
        %1579 = vmatpush1.bf16.msra.mxu0 %v1518
        %1580 = vmatprep.subr.bf16.mxu0 0
        %1581 = vmatpush1.bf16.msra.mxu0 %v1519
        %1582 = vmatprep.subr.bf16.mxu0 0
        %1583 = vmatpush1.bf16.msra.mxu0 %v1520
        %1584 = vmatprep.subr.bf16.mxu0 0
        %1585 = vmatpush1.bf16.msra.mxu0 %v1521
        %1586 = vmatprep.mubr.bf16.mxu0 %v559
        %1587 = vmatmul.mubr.bf16.gmra.mrb[0].mxu0 %v467
        %v1588 = vpop.f32.mrb[0].mxu0
        %v1589 = vadd.f32 %v1284, %v1588
        %v1590 = vpop.f32.mrb[0].mxu0
        %v1591 = vpop.f32.mrb[0].mxu0
        %v1592 = vadd.f32 %v1287, %v1591
        %v1593 = vpop.f32.mrb[0].mxu0
        %1594 = vmatprep.mubr.bf16.mxu0 %v571
        %1595 = vmatmul.mubr.bf16.gmra.mrb[0].mxu0 %v468
        %v1596 = vpop.f32.mrb[0].mxu0
        %v1597 = vadd.f32 %v1292, %v1596
        %v1598 = vpop.f32.mrb[0].mxu0
        %v1599 = vpop.f32.mrb[0].mxu0
        %v1600 = vadd.f32 %v1295, %v1599
        %v1601 = vpop.f32.mrb[0].mxu0
        %1602 = vmatprep.mubr.bf16.mxu0 %v583
        %1603 = vmatmul.mubr.bf16.gmra.mrb[0].mxu0 %v469
        %v1604 = vpop.f32.mrb[0].mxu0
        %v1605 = vadd.f32 %v1300, %v1604
        %v1606 = vpop.f32.mrb[0].mxu0
        %v1607 = vpop.f32.mrb[0].mxu0
        %v1608 = vadd.f32 %v1303, %v1607
        %v1609 = vpop.f32.mrb[0].mxu0
        %1610 = vmatprep.mubr.bf16.mxu0 %v595
        %1611 = vmatmul.mubr.bf16.gmra.mrb[0].mxu0 %v470
        %v1612 = vpop.f32.mrb[0].mxu0
        %v1613 = vadd.f32 %v1308, %v1612
        %v1614 = vpop.f32.mrb[0].mxu0
        %v1615 = vpop.f32.mrb[0].mxu0
        %v1616 = vadd.f32 %v1311, %v1615
        %v1617 = vpop.f32.mrb[0].mxu0
        %1618 = vmatprep.mubr.bf16.mxu0 %v607
        %1619 = vmatmul.mubr.bf16.gmra.mrb[0].mxu0 %v471
        %v1620 = vpop.f32.mrb[0].mxu0
        %v1621 = vadd.f32 %v1316, %v1620
        %v1622 = vpop.f32.mrb[0].mxu0
        %v1623 = vpop.f32.mrb[0].mxu0
        %v1624 = vadd.f32 %v1319, %v1623
        %v1625 = vpop.f32.mrb[0].mxu0
        %1626 = vmatprep.mubr.bf16.mxu0 %v619
        %1627 = vmatmul.mubr.bf16.gmra.mrb[0].mxu0 %v472
        %v1628 = vpop.f32.mrb[0].mxu0
        %v1629 = vadd.f32 %v1324, %v1628
        %v1630 = vpop.f32.mrb[0].mxu0
        %v1631 = vpop.f32.mrb[0].mxu0
        %v1632 = vadd.f32 %v1327, %v1631
        %v1633 = vpop.f32.mrb[0].mxu0
        %1634 = vmatprep.mubr.bf16.mxu0 %v631
        %1635 = vmatmul.mubr.bf16.gmra.mrb[0].mxu0 %v473
        %v1636 = vpop.f32.mrb[0].mxu0
        %v1637 = vadd.f32 %v1332, %v1636
        %v1638 = vpop.f32.mrb[0].mxu0
        %v1639 = vpop.f32.mrb[0].mxu0
        %v1640 = vadd.f32 %v1335, %v1639
        %v1641 = vpop.f32.mrb[0].mxu0
        %1642 = vmatprep.mubr.bf16.mxu0 %v643
        %1643 = vmatmul.mubr.bf16.gmra.mrb[0].mxu0 %v474
        %v1644 = vpop.f32.mrb[0].mxu0
        %v1645 = vadd.f32 %v1340, %v1644
        %v1646 = vpop.f32.mrb[0].mxu0
        %v1647 = vpop.f32.mrb[0].mxu0
        %v1648 = vadd.f32 %v1343, %v1647
        %v1649 = vpop.f32.mrb[0].mxu0
        %1650 = vmatprep.mubr.bf16.mxu0 %v655
        %1651 = vmatmul.mubr.bf16.gmra.mrb[0].mxu0 %v475
        %v1652 = vpop.f32.mrb[0].mxu0
        %v1653 = vadd.f32 %v1348, %v1652
        %v1654 = vpop.f32.mrb[0].mxu0
        %v1655 = vpop.f32.mrb[0].mxu0
        %v1656 = vadd.f32 %v1351, %v1655
        %v1657 = vpop.f32.mrb[0].mxu0
        %1658 = vmatprep.mubr.bf16.mxu0 %v667
        %1659 = vmatmul.mubr.bf16.gmra.mrb[0].mxu0 %v476
        %v1660 = vpop.f32.mrb[0].mxu0
        %v1661 = vadd.f32 %v1356, %v1660
        %v1662 = vpop.f32.mrb[0].mxu0
        %v1663 = vpop.f32.mrb[0].mxu0
        %v1664 = vadd.f32 %v1359, %v1663
        %v1665 = vpop.f32.mrb[0].mxu0
        %1666 = vmatprep.mubr.bf16.mxu0 %v679
        %1667 = vmatmul.mubr.bf16.gmra.mrb[0].mxu0 %v477
        %v1668 = vpop.f32.mrb[0].mxu0
        %v1669 = vadd.f32 %v1364, %v1668
        %v1670 = vpop.f32.mrb[0].mxu0
        %v1671 = vpop.f32.mrb[0].mxu0
        %v1672 = vadd.f32 %v1367, %v1671
        %v1673 = vpop.f32.mrb[0].mxu0
        %1674 = vmatprep.mubr.bf16.mxu0 %v691
        %1675 = vmatmul.mubr.bf16.gmra.mrb[0].mxu0 %v478
        %v1676 = vpop.f32.mrb[0].mxu0
        %v1677 = vadd.f32 %v1372, %v1676
        %v1678 = vpop.f32.mrb[0].mxu0
        %v1679 = vpop.f32.mrb[0].mxu0
        %v1680 = vadd.f32 %v1375, %v1679
        %v1681 = vpop.f32.mrb[0].mxu0
        %1682 = vmatprep.mubr.bf16.mxu0 %v703
        %1683 = vmatmul.mubr.bf16.gmra.mrb[0].mxu0 %v479
        %v1684 = vpop.f32.mrb[0].mxu0
        %v1685 = vadd.f32 %v1380, %v1684
        %v1686 = vpop.f32.mrb[0].mxu0
        %v1687 = vpop.f32.mrb[0].mxu0
        %v1688 = vadd.f32 %v1383, %v1687
        %v1689 = vpop.f32.mrb[0].mxu0
        %1690 = vmatprep.mubr.bf16.mxu0 %v715
        %1691 = vmatmul.mubr.bf16.gmra.mrb[0].mxu0 %v480
        %v1692 = vpop.f32.mrb[0].mxu0
        %v1693 = vadd.f32 %v1388, %v1692
        %v1694 = vpop.f32.mrb[0].mxu0
        %v1695 = vpop.f32.mrb[0].mxu0
        %v1696 = vadd.f32 %v1391, %v1695
        %v1697 = vpop.f32.mrb[0].mxu0
        %1698 = vmatprep.mubr.bf16.mxu0 %v727
        %1699 = vmatmul.mubr.bf16.gmra.mrb[0].mxu0 %v481
        %v1700 = vpop.f32.mrb[0].mxu0
        %v1701 = vadd.f32 %v1396, %v1700
        %v1702 = vpop.f32.mrb[0].mxu0
        %v1703 = vpop.f32.mrb[0].mxu0
        %v1704 = vadd.f32 %v1399, %v1703
        %v1705 = vpop.f32.mrb[0].mxu0
        %1706 = vmatprep.mubr.bf16.mxu0 %v739
        %1707 = vmatmul.mubr.bf16.gmra.mrb[0].mxu0 %v482
        %v1708 = vpop.f32.mrb[0].mxu0
        %v1709 = vadd.f32 %v1404, %v1708
        %v1710 = vpop.f32.mrb[0].mxu0
        %v1711 = vpop.f32.mrb[0].mxu0
        %v1712 = vadd.f32 %v1407, %v1711
        %v1713 = vpop.f32.mrb[0].mxu0
        %1714 = vdwg.mxu0
        %1715 = vmatprep.subr.bf16.mxu0 0
        %1716 = vmatpush1.bf16.msra.mxu0 %v1522
        %1717 = vmatprep.subr.bf16.mxu0 0
        %1718 = vmatpush1.bf16.msra.mxu0 %v1523
        %1719 = vmatprep.subr.bf16.mxu0 0
        %1720 = vmatpush1.bf16.msra.mxu0 %v1524
        %1721 = vmatprep.subr.bf16.mxu0 0
        %1722 = vmatpush1.bf16.msra.mxu0 %v1525
        %1723 = vmatprep.subr.bf16.mxu0 0
        %1724 = vmatpush1.bf16.msra.mxu0 %v1526
        %1725 = vmatprep.subr.bf16.mxu0 0
        %1726 = vmatpush1.bf16.msra.mxu0 %v1527
        %1727 = vmatprep.subr.bf16.mxu0 0
        %1728 = vmatpush1.bf16.msra.mxu0 %v1528
        %1729 = vmatprep.subr.bf16.mxu0 0
        %1730 = vmatpush1.bf16.msra.mxu0 %v1529
        %1731 = vmatprep.subr.bf16.mxu0 0
        %1732 = vmatpush1.bf16.msra.mxu0 0
        %1733 = vmatprep.subr.bf16.mxu0 0
        %1734 = vmatpush1.bf16.msra.mxu0 0
        %1735 = vmatprep.subr.bf16.mxu0 0
        %1736 = vmatpush1.bf16.msra.mxu0 0
        %1737 = vmatprep.subr.bf16.mxu0 0
        %1738 = vmatpush1.bf16.msra.mxu0 0
        %1739 = vmatprep.subr.bf16.mxu0 0
        %1740 = vmatpush1.bf16.msra.mxu0 0
        %1741 = vmatprep.subr.bf16.mxu0 0
        %1742 = vmatpush1.bf16.msra.mxu0 0
        %1743 = vmatprep.subr.bf16.mxu0 0
        %1744 = vmatpush1.bf16.msra.mxu0 0
        %1745 = vmatprep.subr.bf16.mxu0 0
        %1746 = vmatpush1.bf16.msra.mxu0 0
        %1747 = vmatprep.mubr.bf16.mxu0 0
        %1748 = vmatmul.mubr.bf16.gmra.mrb[0].mxu0 %v759
        %v1749 = vpop.f32.mrb[0].mxu0
        %v1750 = vadd.f32 %v1589, %v1749
        %v1751 = vpop.f32.mrb[0].mxu0
        %v1752 = vpop.f32.mrb[0].mxu0
        %v1753 = vadd.f32 %v1592, %v1752
        %v1754 = vpop.f32.mrb[0].mxu0
        %1755 = vmatprep.mubr.bf16.mxu0 0
        %1756 = vmatmul.mubr.bf16.gmra.mrb[0].mxu0 %v762
        %v1757 = vpop.f32.mrb[0].mxu0
        %v1758 = vadd.f32 %v1597, %v1757
        %v1759 = vpop.f32.mrb[0].mxu0
        %v1760 = vpop.f32.mrb[0].mxu0
        %v1761 = vadd.f32 %v1600, %v1760
        %v1762 = vpop.f32.mrb[0].mxu0
        %1763 = vmatprep.mubr.bf16.mxu0 0
        %1764 = vmatmul.mubr.bf16.gmra.mrb[0].mxu0 %v765
        %v1765 = vpop.f32.mrb[0].mxu0
        %v1766 = vadd.f32 %v1605, %v1765
        %v1767 = vpop.f32.mrb[0].mxu0
        %v1768 = vpop.f32.mrb[0].mxu0
        %v1769 = vadd.f32 %v1608, %v1768
        %v1770 = vpop.f32.mrb[0].mxu0
        %1771 = vmatprep.mubr.bf16.mxu0 0
        %1772 = vmatmul.mubr.bf16.gmra.mrb[0].mxu0 %v768
        %v1773 = vpop.f32.mrb[0].mxu0
        %v1774 = vadd.f32 %v1613, %v1773
        %v1775 = vpop.f32.mrb[0].mxu0
        %v1776 = vpop.f32.mrb[0].mxu0
        %v1777 = vadd.f32 %v1616, %v1776
        %v1778 = vpop.f32.mrb[0].mxu0
        %1779 = vmatprep.mubr.bf16.mxu0 0
        %1780 = vmatmul.mubr.bf16.gmra.mrb[0].mxu0 %v771
        %v1781 = vpop.f32.mrb[0].mxu0
        %v1782 = vadd.f32 %v1621, %v1781
        %v1783 = vpop.f32.mrb[0].mxu0
        %v1784 = vpop.f32.mrb[0].mxu0
        %v1785 = vadd.f32 %v1624, %v1784
        %v1786 = vpop.f32.mrb[0].mxu0
        %1787 = vmatprep.mubr.bf16.mxu0 0
        %1788 = vmatmul.mubr.bf16.gmra.mrb[0].mxu0 %v774
        %v1789 = vpop.f32.mrb[0].mxu0
        %v1790 = vadd.f32 %v1629, %v1789
        %v1791 = vpop.f32.mrb[0].mxu0
        %v1792 = vpop.f32.mrb[0].mxu0
        %v1793 = vadd.f32 %v1632, %v1792
        %v1794 = vpop.f32.mrb[0].mxu0
        %1795 = vmatprep.mubr.bf16.mxu0 0
        %1796 = vmatmul.mubr.bf16.gmra.mrb[0].mxu0 %v777
        %v1797 = vpop.f32.mrb[0].mxu0
        %v1798 = vadd.f32 %v1637, %v1797
        %v1799 = vpop.f32.mrb[0].mxu0
        %v1800 = vpop.f32.mrb[0].mxu0
        %v1801 = vadd.f32 %v1640, %v1800
        %v1802 = vpop.f32.mrb[0].mxu0
        %1803 = vmatprep.mubr.bf16.mxu0 0
        %1804 = vmatmul.mubr.bf16.gmra.mrb[0].mxu0 %v780
        %v1805 = vpop.f32.mrb[0].mxu0
        %v1806 = vadd.f32 %v1645, %v1805
        %v1807 = vpop.f32.mrb[0].mxu0
        %v1808 = vpop.f32.mrb[0].mxu0
        %v1809 = vadd.f32 %v1648, %v1808
        %v1810 = vpop.f32.mrb[0].mxu0
        %1811 = vmatprep.mubr.bf16.mxu0 0
        %1812 = vmatmul.mubr.bf16.gmra.mrb[0].mxu0 %v783
        %v1813 = vpop.f32.mrb[0].mxu0
        %v1814 = vadd.f32 %v1653, %v1813
        %v1815 = vpop.f32.mrb[0].mxu0
        %v1816 = vpop.f32.mrb[0].mxu0
        %v1817 = vadd.f32 %v1656, %v1816
        %v1818 = vpop.f32.mrb[0].mxu0
        %1819 = vmatprep.mubr.bf16.mxu0 0
        %1820 = vmatmul.mubr.bf16.gmra.mrb[0].mxu0 %v786
        %v1821 = vpop.f32.mrb[0].mxu0
        %v1822 = vadd.f32 %v1661, %v1821
        %v1823 = vpop.f32.mrb[0].mxu0
        %v1824 = vpop.f32.mrb[0].mxu0
        %v1825 = vadd.f32 %v1664, %v1824
        %v1826 = vpop.f32.mrb[0].mxu0
        %1827 = vmatprep.mubr.bf16.mxu0 0
        %1828 = vmatmul.mubr.bf16.gmra.mrb[0].mxu0 %v789
        %v1829 = vpop.f32.mrb[0].mxu0
        %v1830 = vadd.f32 %v1669, %v1829
        %v1831 = vpop.f32.mrb[0].mxu0
        %v1832 = vpop.f32.mrb[0].mxu0
        %v1833 = vadd.f32 %v1672, %v1832
        %v1834 = vpop.f32.mrb[0].mxu0
        %1835 = vmatprep.mubr.bf16.mxu0 0
        %1836 = vmatmul.mubr.bf16.gmra.mrb[0].mxu0 %v792
        %v1837 = vpop.f32.mrb[0].mxu0
        %v1838 = vadd.f32 %v1677, %v1837
        %v1839 = vpop.f32.mrb[0].mxu0
        %v1840 = vpop.f32.mrb[0].mxu0
        %v1841 = vadd.f32 %v1680, %v1840
        %v1842 = vpop.f32.mrb[0].mxu0
        %1843 = vmatprep.mubr.bf16.mxu0 0
        %1844 = vmatmul.mubr.bf16.gmra.mrb[0].mxu0 %v795
        %v1845 = vpop.f32.mrb[0].mxu0
        %v1846 = vadd.f32 %v1685, %v1845
        %v1847 = vpop.f32.mrb[0].mxu0
        %v1848 = vpop.f32.mrb[0].mxu0
        %v1849 = vadd.f32 %v1688, %v1848
        %v1850 = vpop.f32.mrb[0].mxu0
        %1851 = vmatprep.mubr.bf16.mxu0 0
        %1852 = vmatmul.mubr.bf16.gmra.mrb[0].mxu0 %v798
        %v1853 = vpop.f32.mrb[0].mxu0
        %v1854 = vadd.f32 %v1693, %v1853
        %v1855 = vpop.f32.mrb[0].mxu0
        %v1856 = vpop.f32.mrb[0].mxu0
        %v1857 = vadd.f32 %v1696, %v1856
        %v1858 = vpop.f32.mrb[0].mxu0
        %1859 = vmatprep.mubr.bf16.mxu0 0
        %1860 = vmatmul.mubr.bf16.gmra.mrb[0].mxu0 %v801
        %v1861 = vpop.f32.mrb[0].mxu0
        %v1862 = vadd.f32 %v1701, %v1861
        %v1863 = vpop.f32.mrb[0].mxu0
        %v1864 = vpop.f32.mrb[0].mxu0
        %v1865 = vadd.f32 %v1704, %v1864
        %v1866 = vpop.f32.mrb[0].mxu0
        %1867 = vmatprep.mubr.bf16.mxu0 0
        %1868 = vmatmul.mubr.bf16.gmra.mrb[0].mxu0 %v804
        %v1869 = vpop.f32.mrb[0].mxu0
        %v1870 = vadd.f32 %v1709, %v1869
        %v1871 = vpop.f32.mrb[0].mxu0
        %v1872 = vpop.f32.mrb[0].mxu0
        %v1873 = vadd.f32 %v1712, %v1872
        %v1874 = vpop.f32.mrb[0].mxu0
        %1875 = vdwg.mxu0
        %v1878 = vunpack.c.l.b16 %v400
        %v1879 = vunpack.c.l.b16 %v401
        %v1880 = vpack.c.b16 %v1879, %v1878
        %v1883 = vunpack.c.l.b16 %v402
        %v1884 = vpack.c.b16 %v1883, %v1883
        %v1886 = vshrl.u32 %v1880, 16
        %v1888 = vshll.u32 %v1880, 16
        %v1890 = vrot.slane %v1888, 1
        %v1891 = vor.u32 %v1886, %v1890
        %v1893 = vshll.u32 %v1884, 16
        %v1895 = vrot.slane %v1893, 1
        %v1896 = vsel %vm547, %v1891, %v1895
        %v1898 = vrot.slane %v1880, 1
        %v1899 = vrot.slane %v1884, 1
        %v1900 = vsel %vm756, %v1898, %v1899
        %s1902 = scalar_lea.vmem [#allocation2], 384
        %v1903 = vld [vmem:[%s1902] sm:$0xf]
        %v1904 = vld [vmem:[%s1902 + $0x4] sm:$0xf]
        %v1905 = vld [vmem:[%s1902 + $0x8] sm:$0xf]
        %v1906 = vld [vmem:[%s1902 + $0xc] sm:$0xf]
        %v1907 = vld [vmem:[%s1902 + $0x10] sm:$0xf]
        %v1908 = vld [vmem:[%s1902 + $0x14] sm:$0xf]
        %v1909 = vld [vmem:[%s1902 + $0x18] sm:$0xf]
        %v1910 = vld [vmem:[%s1902 + $0x1c] sm:$0xf]
        %v1911 = vld [vmem:[%s1902 + $0x20] sm:$0xf]
        %v1912 = vld [vmem:[%s1902 + $0x24] sm:$0xf]
        %v1913 = vld [vmem:[%s1902 + $0x28] sm:$0xf]
        %v1914 = vld [vmem:[%s1902 + $0x2c] sm:$0xf]
        %v1915 = vld [vmem:[%s1902 + $0x30] sm:$0xf]
        %v1916 = vld [vmem:[%s1902 + $0x34] sm:$0xf]
        %v1917 = vld [vmem:[%s1902 + $0x38] sm:$0xf]
        %v1918 = vld [vmem:[%s1902 + $0x3c] sm:$0xf]
        %v1919 = vld [vmem:[%s1902 + $0x40] sm:$0xf]
        %v1920 = vld [vmem:[%s1902 + $0x44] sm:$0xf]
        %v1921 = vld [vmem:[%s1902 + $0x48] sm:$0xf]
        %v1922 = vld [vmem:[%s1902 + $0x4c] sm:$0xf]
        %v1923 = vld [vmem:[%s1902 + $0x50] sm:$0xf]
        %v1924 = vld [vmem:[%s1902 + $0x54] sm:$0xf]
        %v1925 = vld [vmem:[%s1902 + $0x58] sm:$0xf]
        %v1926 = vld [vmem:[%s1902 + $0x5c] sm:$0xf]
        %v1927 = vld [vmem:[%s1902 + $0x60] sm:$0xf]
        %v1928 = vld [vmem:[%s1902 + $0x64] sm:$0xf]
        %v1929 = vld [vmem:[%s1902 + $0x68] sm:$0xf]
        %v1930 = vld [vmem:[%s1902 + $0x6c] sm:$0xf]
        %v1931 = vld [vmem:[%s1902 + $0x70] sm:$0xf]
        %v1932 = vld [vmem:[%s1902 + $0x74] sm:$0xf]
        %v1933 = vld [vmem:[%s1902 + $0x78] sm:$0xf]
        %v1934 = vld [vmem:[%s1902 + $0x7c] sm:$0xf]
        %v1935 = vld [vmem:[%s1902 + $0x80] sm:$0xf]
        %v1936 = vld [vmem:[%s1902 + $0x84] sm:$0xf]
        %v1937 = vld [vmem:[%s1902 + $0x88] sm:$0xf]
        %v1938 = vld [vmem:[%s1902 + $0x8c] sm:$0xf]
        %v1939 = vld [vmem:[%s1902 + $0x90] sm:$0xf]
        %v1940 = vld [vmem:[%s1902 + $0x94] sm:$0xf]
        %v1941 = vld [vmem:[%s1902 + $0x98] sm:$0xf]
        %v1942 = vld [vmem:[%s1902 + $0x9c] sm:$0xf]
        %v1943 = vld [vmem:[%s1902 + $0xa0] sm:$0xf]
        %v1944 = vld [vmem:[%s1902 + $0xa4] sm:$0xf]
        %v1945 = vld [vmem:[%s1902 + $0xa8] sm:$0xf]
        %v1946 = vld [vmem:[%s1902 + $0xac] sm:$0xf]
        %v1947 = vld [vmem:[%s1902 + $0xb0] sm:$0xf]
        %v1948 = vld [vmem:[%s1902 + $0xb4] sm:$0xf]
        %v1949 = vld [vmem:[%s1902 + $0xb8] sm:$0xf]
        %v1950 = vld [vmem:[%s1902 + $0xbc] sm:$0xf]
        %v1999 = vunpack.c.l.b16 %v1903
        %v2000 = vunpack.c.l.b16 %v1904
        %v2001 = vunpack.c.l.b16 %v1905
        %v2002 = vunpack.c.l.b16 %v1906
        %v2003 = vunpack.c.l.b16 %v1907
        %v2004 = vunpack.c.l.b16 %v1908
        %v2005 = vunpack.c.l.b16 %v1909
        %v2006 = vunpack.c.l.b16 %v1910
        %v2007 = vunpack.c.l.b16 %v1911
        %v2008 = vunpack.c.l.b16 %v1912
        %v2009 = vunpack.c.l.b16 %v1913
        %v2010 = vunpack.c.l.b16 %v1914
        %v2011 = vunpack.c.l.b16 %v1915
        %v2012 = vunpack.c.l.b16 %v1916
        %v2013 = vunpack.c.l.b16 %v1917
        %v2014 = vunpack.c.l.b16 %v1918
        %v2015 = vunpack.c.l.b16 %v1919
        %v2016 = vunpack.c.l.b16 %v1920
        %v2017 = vunpack.c.l.b16 %v1921
        %v2018 = vunpack.c.l.b16 %v1922
        %v2019 = vunpack.c.l.b16 %v1923
        %v2020 = vunpack.c.l.b16 %v1924
        %v2021 = vunpack.c.l.b16 %v1925
        %v2022 = vunpack.c.l.b16 %v1926
        %v2023 = vunpack.c.l.b16 %v1927
        %v2024 = vunpack.c.l.b16 %v1928
        %v2025 = vunpack.c.l.b16 %v1929
        %v2026 = vunpack.c.l.b16 %v1930
        %v2027 = vunpack.c.l.b16 %v1931
        %v2028 = vunpack.c.l.b16 %v1932
        %v2029 = vunpack.c.l.b16 %v1933
        %v2030 = vunpack.c.l.b16 %v1934
        %v2031 = vunpack.c.l.b16 %v1935
        %v2032 = vunpack.c.l.b16 %v1936
        %v2033 = vunpack.c.l.b16 %v1937
        %v2034 = vunpack.c.l.b16 %v1938
        %v2035 = vunpack.c.l.b16 %v1939
        %v2036 = vunpack.c.l.b16 %v1940
        %v2037 = vunpack.c.l.b16 %v1941
        %v2038 = vunpack.c.l.b16 %v1942
        %v2039 = vunpack.c.l.b16 %v1943
        %v2040 = vunpack.c.l.b16 %v1944
        %v2041 = vunpack.c.l.b16 %v1945
        %v2042 = vunpack.c.l.b16 %v1946
        %v2043 = vunpack.c.l.b16 %v1947
        %v2044 = vunpack.c.l.b16 %v1948
        %v2045 = vunpack.c.l.b16 %v1949
        %v2046 = vunpack.c.l.b16 %v1950
        %v2047 = vpack.c.b16 %v2000, %v1999
        %v2048 = vpack.c.b16 %v2002, %v2001
        %v2049 = vpack.c.b16 %v2004, %v2003
        %v2050 = vpack.c.b16 %v2006, %v2005
        %v2051 = vpack.c.b16 %v2008, %v2007
        %v2052 = vpack.c.b16 %v2010, %v2009
        %v2053 = vpack.c.b16 %v2012, %v2011
        %v2054 = vpack.c.b16 %v2014, %v2013
        %v2055 = vpack.c.b16 %v2016, %v2015
        %v2056 = vpack.c.b16 %v2018, %v2017
        %v2057 = vpack.c.b16 %v2020, %v2019
        %v2058 = vpack.c.b16 %v2022, %v2021
        %v2059 = vpack.c.b16 %v2024, %v2023
        %v2060 = vpack.c.b16 %v2026, %v2025
        %v2061 = vpack.c.b16 %v2028, %v2027
        %v2062 = vpack.c.b16 %v2030, %v2029
        %v2063 = vpack.c.b16 %v2032, %v2031
        %v2064 = vpack.c.b16 %v2034, %v2033
        %v2065 = vpack.c.b16 %v2036, %v2035
        %v2066 = vpack.c.b16 %v2038, %v2037
        %v2067 = vpack.c.b16 %v2040, %v2039
        %v2068 = vpack.c.b16 %v2042, %v2041
        %v2069 = vpack.c.b16 %v2044, %v2043
        %v2070 = vpack.c.b16 %v2046, %v2045
        %2095 = vmatprep.subr.bf16.mxu0 0
        %2096 = vmatpush1.bf16.msra.mxu0 %v2047
        %2097 = vmatprep.subr.bf16.mxu0 0
        %2098 = vmatpush1.bf16.msra.mxu0 %v2048
        %2099 = vmatprep.subr.bf16.mxu0 0
        %2100 = vmatpush1.bf16.msra.mxu0 %v2049
        %2101 = vmatprep.subr.bf16.mxu0 0
        %2102 = vmatpush1.bf16.msra.mxu0 %v2050
        %2103 = vmatprep.subr.bf16.mxu0 0
        %2104 = vmatpush1.bf16.msra.mxu0 %v2051
        %2105 = vmatprep.subr.bf16.mxu0 0
        %2106 = vmatpush1.bf16.msra.mxu0 %v2052
        %2107 = vmatprep.subr.bf16.mxu0 0
        %2108 = vmatpush1.bf16.msra.mxu0 %v2053
        %2109 = vmatprep.subr.bf16.mxu0 0
        %2110 = vmatpush1.bf16.msra.mxu0 %v2054
        %2111 = vmatprep.subr.bf16.mxu0 0
        %2112 = vmatpush1.bf16.msra.mxu0 %v2055
        %2113 = vmatprep.subr.bf16.mxu0 0
        %2114 = vmatpush1.bf16.msra.mxu0 %v2056
        %2115 = vmatprep.subr.bf16.mxu0 0
        %2116 = vmatpush1.bf16.msra.mxu0 %v2057
        %2117 = vmatprep.subr.bf16.mxu0 0
        %2118 = vmatpush1.bf16.msra.mxu0 %v2058
        %2119 = vmatprep.subr.bf16.mxu0 0
        %2120 = vmatpush1.bf16.msra.mxu0 %v2059
        %2121 = vmatprep.subr.bf16.mxu0 0
        %2122 = vmatpush1.bf16.msra.mxu0 %v2060
        %2123 = vmatprep.subr.bf16.mxu0 0
        %2124 = vmatpush1.bf16.msra.mxu0 %v2061
        %2125 = vmatprep.subr.bf16.mxu0 0
        %2126 = vmatpush1.bf16.msra.mxu0 %v2062
        %2127 = vmatprep.mubr.bf16.mxu0 %v583
        %2128 = vmatmul.mubr.bf16.gmra.mrb[0].mxu0 %v469
        %v2129 = vpop.f32.mrb[0].mxu0
        %v2130 = vadd.f32 0.0, %v2129
        %v2131 = vpop.f32.mrb[0].mxu0
        %v2132 = vpop.f32.mrb[0].mxu0
        %v2133 = vadd.f32 0.0, %v2132
        %v2134 = vpop.f32.mrb[0].mxu0
        %2135 = vmatprep.mubr.bf16.mxu0 %v595
        %2136 = vmatmul.mubr.bf16.gmra.mrb[0].mxu0 %v470
        %v2137 = vpop.f32.mrb[0].mxu0
        %v2138 = vadd.f32 0.0, %v2137
        %v2139 = vpop.f32.mrb[0].mxu0
        %v2140 = vpop.f32.mrb[0].mxu0
        %v2141 = vadd.f32 0.0, %v2140
        %v2142 = vpop.f32.mrb[0].mxu0
        %2143 = vmatprep.mubr.bf16.mxu0 %v607
        %2144 = vmatmul.mubr.bf16.gmra.mrb[0].mxu0 %v471
        %v2145 = vpop.f32.mrb[0].mxu0
        %v2146 = vadd.f32 0.0, %v2145
        %v2147 = vpop.f32.mrb[0].mxu0
        %v2148 = vpop.f32.mrb[0].mxu0
        %v2149 = vadd.f32 0.0, %v2148
        %v2150 = vpop.f32.mrb[0].mxu0
        %2151 = vmatprep.mubr.bf16.mxu0 %v619
        %2152 = vmatmul.mubr.bf16.gmra.mrb[0].mxu0 %v472
        %v2153 = vpop.f32.mrb[0].mxu0
        %v2154 = vadd.f32 0.0, %v2153
        %v2155 = vpop.f32.mrb[0].mxu0
        %v2156 = vpop.f32.mrb[0].mxu0
        %v2157 = vadd.f32 0.0, %v2156
        %v2158 = vpop.f32.mrb[0].mxu0
        %2159 = vmatprep.mubr.bf16.mxu0 %v631
        %2160 = vmatmul.mubr.bf16.gmra.mrb[0].mxu0 %v473
        %v2161 = vpop.f32.mrb[0].mxu0
        %v2162 = vadd.f32 0.0, %v2161
        %v2163 = vpop.f32.mrb[0].mxu0
        %v2164 = vpop.f32.mrb[0].mxu0
        %v2165 = vadd.f32 0.0, %v2164
        %v2166 = vpop.f32.mrb[0].mxu0
        %2167 = vmatprep.mubr.bf16.mxu0 %v643
        %2168 = vmatmul.mubr.bf16.gmra.mrb[0].mxu0 %v474
        %v2169 = vpop.f32.mrb[0].mxu0
        %v2170 = vadd.f32 0.0, %v2169
        %v2171 = vpop.f32.mrb[0].mxu0
        %v2172 = vpop.f32.mrb[0].mxu0
        %v2173 = vadd.f32 0.0, %v2172
        %v2174 = vpop.f32.mrb[0].mxu0
        %2175 = vmatprep.mubr.bf16.mxu0 %v655
        %2176 = vmatmul.mubr.bf16.gmra.mrb[0].mxu0 %v475
        %v2177 = vpop.f32.mrb[0].mxu0
        %v2178 = vadd.f32 0.0, %v2177
        %v2179 = vpop.f32.mrb[0].mxu0
        %v2180 = vpop.f32.mrb[0].mxu0
        %v2181 = vadd.f32 0.0, %v2180
        %v2182 = vpop.f32.mrb[0].mxu0
        %2183 = vmatprep.mubr.bf16.mxu0 %v667
        %2184 = vmatmul.mubr.bf16.gmra.mrb[0].mxu0 %v476
        %v2185 = vpop.f32.mrb[0].mxu0
        %v2186 = vadd.f32 0.0, %v2185
        %v2187 = vpop.f32.mrb[0].mxu0
        %v2188 = vpop.f32.mrb[0].mxu0
        %v2189 = vadd.f32 0.0, %v2188
        %v2190 = vpop.f32.mrb[0].mxu0
        %2191 = vmatprep.mubr.bf16.mxu0 %v679
        %2192 = vmatmul.mubr.bf16.gmra.mrb[0].mxu0 %v477
        %v2193 = vpop.f32.mrb[0].mxu0
        %v2194 = vadd.f32 0.0, %v2193
        %v2195 = vpop.f32.mrb[0].mxu0
        %v2196 = vpop.f32.mrb[0].mxu0
        %v2197 = vadd.f32 0.0, %v2196
        %v2198 = vpop.f32.mrb[0].mxu0
        %2199 = vmatprep.mubr.bf16.mxu0 %v691
        %2200 = vmatmul.mubr.bf16.gmra.mrb[0].mxu0 %v478
        %v2201 = vpop.f32.mrb[0].mxu0
        %v2202 = vadd.f32 0.0, %v2201
        %v2203 = vpop.f32.mrb[0].mxu0
        %v2204 = vpop.f32.mrb[0].mxu0
        %v2205 = vadd.f32 0.0, %v2204
        %v2206 = vpop.f32.mrb[0].mxu0
        %2207 = vmatprep.mubr.bf16.mxu0 %v703
        %2208 = vmatmul.mubr.bf16.gmra.mrb[0].mxu0 %v479
        %v2209 = vpop.f32.mrb[0].mxu0
        %v2210 = vadd.f32 0.0, %v2209
        %v2211 = vpop.f32.mrb[0].mxu0
        %v2212 = vpop.f32.mrb[0].mxu0
        %v2213 = vadd.f32 0.0, %v2212
        %v2214 = vpop.f32.mrb[0].mxu0
        %2215 = vmatprep.mubr.bf16.mxu0 %v715
        %2216 = vmatmul.mubr.bf16.gmra.mrb[0].mxu0 %v480
        %v2217 = vpop.f32.mrb[0].mxu0
        %v2218 = vadd.f32 0.0, %v2217
        %v2219 = vpop.f32.mrb[0].mxu0
        %v2220 = vpop.f32.mrb[0].mxu0
        %v2221 = vadd.f32 0.0, %v2220
        %v2222 = vpop.f32.mrb[0].mxu0
        %2223 = vmatprep.mubr.bf16.mxu0 %v727
        %2224 = vmatmul.mubr.bf16.gmra.mrb[0].mxu0 %v481
        %v2225 = vpop.f32.mrb[0].mxu0
        %v2226 = vadd.f32 0.0, %v2225
        %v2227 = vpop.f32.mrb[0].mxu0
        %v2228 = vpop.f32.mrb[0].mxu0
        %v2229 = vadd.f32 0.0, %v2228
        %v2230 = vpop.f32.mrb[0].mxu0
        %2231 = vmatprep.mubr.bf16.mxu0 %v739
        %2232 = vmatmul.mubr.bf16.gmra.mrb[0].mxu0 %v482
        %v2233 = vpop.f32.mrb[0].mxu0
        %v2234 = vadd.f32 0.0, %v2233
        %v2235 = vpop.f32.mrb[0].mxu0
        %v2236 = vpop.f32.mrb[0].mxu0
        %v2237 = vadd.f32 0.0, %v2236
        %v2238 = vpop.f32.mrb[0].mxu0
        %2239 = vmatprep.mubr.bf16.mxu0 %v889
        %2240 = vmatmul.mubr.bf16.gmra.mrb[0].mxu0 %v873
        %v2241 = vpop.f32.mrb[0].mxu0
        %v2242 = vadd.f32 0.0, %v2241
        %v2243 = vpop.f32.mrb[0].mxu0
        %v2244 = vpop.f32.mrb[0].mxu0
        %v2245 = vadd.f32 0.0, %v2244
        %v2246 = vpop.f32.mrb[0].mxu0
        %2247 = vmatprep.mubr.bf16.mxu0 %v1896
        %2248 = vmatmul.mubr.bf16.gmra.mrb[0].mxu0 %v1880
        %v2249 = vpop.f32.mrb[0].mxu0
        %v2250 = vadd.f32 0.0, %v2249
        %v2251 = vpop.f32.mrb[0].mxu0
        %v2252 = vpop.f32.mrb[0].mxu0
        %v2253 = vadd.f32 0.0, %v2252
        %v2254 = vpop.f32.mrb[0].mxu0
        %2255 = vdwg.mxu0
        %2256 = vmatprep.subr.bf16.mxu0 0
        %2257 = vmatpush1.bf16.msra.mxu0 %v2063
        %2258 = vmatprep.subr.bf16.mxu0 0
        %2259 = vmatpush1.bf16.msra.mxu0 %v2064
        %2260 = vmatprep.subr.bf16.mxu0 0
        %2261 = vmatpush1.bf16.msra.mxu0 %v2065
        %2262 = vmatprep.subr.bf16.mxu0 0
        %2263 = vmatpush1.bf16.msra.mxu0 %v2066
        %2264 = vmatprep.subr.bf16.mxu0 0
        %2265 = vmatpush1.bf16.msra.mxu0 %v2067
        %2266 = vmatprep.subr.bf16.mxu0 0
        %2267 = vmatpush1.bf16.msra.mxu0 %v2068
        %2268 = vmatprep.subr.bf16.mxu0 0
        %2269 = vmatpush1.bf16.msra.mxu0 %v2069
        %2270 = vmatprep.subr.bf16.mxu0 0
        %2271 = vmatpush1.bf16.msra.mxu0 %v2070
        %2272 = vmatprep.subr.bf16.mxu0 0
        %2273 = vmatpush1.bf16.msra.mxu0 0
        %2274 = vmatprep.subr.bf16.mxu0 0
        %2275 = vmatpush1.bf16.msra.mxu0 0
        %2276 = vmatprep.subr.bf16.mxu0 0
        %2277 = vmatpush1.bf16.msra.mxu0 0
        %2278 = vmatprep.subr.bf16.mxu0 0
        %2279 = vmatpush1.bf16.msra.mxu0 0
        %2280 = vmatprep.subr.bf16.mxu0 0
        %2281 = vmatpush1.bf16.msra.mxu0 0
        %2282 = vmatprep.subr.bf16.mxu0 0
        %2283 = vmatpush1.bf16.msra.mxu0 0
        %2284 = vmatprep.subr.bf16.mxu0 0
        %2285 = vmatpush1.bf16.msra.mxu0 0
        %2286 = vmatprep.subr.bf16.mxu0 0
        %2287 = vmatpush1.bf16.msra.mxu0 0
        %2288 = vmatprep.mubr.bf16.mxu0 0
        %2289 = vmatmul.mubr.bf16.gmra.mrb[0].mxu0 %v765
        %v2290 = vpop.f32.mrb[0].mxu0
        %v2291 = vadd.f32 %v2130, %v2290
        %v2292 = vpop.f32.mrb[0].mxu0
        %v2293 = vpop.f32.mrb[0].mxu0
        %v2294 = vadd.f32 %v2133, %v2293
        %v2295 = vpop.f32.mrb[0].mxu0
        %2296 = vmatprep.mubr.bf16.mxu0 0
        %2297 = vmatmul.mubr.bf16.gmra.mrb[0].mxu0 %v768
        %v2298 = vpop.f32.mrb[0].mxu0
        %v2299 = vadd.f32 %v2138, %v2298
        %v2300 = vpop.f32.mrb[0].mxu0
        %v2301 = vpop.f32.mrb[0].mxu0
        %v2302 = vadd.f32 %v2141, %v2301
        %v2303 = vpop.f32.mrb[0].mxu0
        %2304 = vmatprep.mubr.bf16.mxu0 0
        %2305 = vmatmul.mubr.bf16.gmra.mrb[0].mxu0 %v771
        %v2306 = vpop.f32.mrb[0].mxu0
        %v2307 = vadd.f32 %v2146, %v2306
        %v2308 = vpop.f32.mrb[0].mxu0
        %v2309 = vpop.f32.mrb[0].mxu0
        %v2310 = vadd.f32 %v2149, %v2309
        %v2311 = vpop.f32.mrb[0].mxu0
        %2312 = vmatprep.mubr.bf16.mxu0 0
        %2313 = vmatmul.mubr.bf16.gmra.mrb[0].mxu0 %v774
        %v2314 = vpop.f32.mrb[0].mxu0
        %v2315 = vadd.f32 %v2154, %v2314
        %v2316 = vpop.f32.mrb[0].mxu0
        %v2317 = vpop.f32.mrb[0].mxu0
        %v2318 = vadd.f32 %v2157, %v2317
        %v2319 = vpop.f32.mrb[0].mxu0
        %2320 = vmatprep.mubr.bf16.mxu0 0
        %2321 = vmatmul.mubr.bf16.gmra.mrb[0].mxu0 %v777
        %v2322 = vpop.f32.mrb[0].mxu0
        %v2323 = vadd.f32 %v2162, %v2322
        %v2324 = vpop.f32.mrb[0].mxu0
        %v2325 = vpop.f32.mrb[0].mxu0
        %v2326 = vadd.f32 %v2165, %v2325
        %v2327 = vpop.f32.mrb[0].mxu0
        %2328 = vmatprep.mubr.bf16.mxu0 0
        %2329 = vmatmul.mubr.bf16.gmra.mrb[0].mxu0 %v780
        %v2330 = vpop.f32.mrb[0].mxu0
        %v2331 = vadd.f32 %v2170, %v2330
        %v2332 = vpop.f32.mrb[0].mxu0
        %v2333 = vpop.f32.mrb[0].mxu0
        %v2334 = vadd.f32 %v2173, %v2333
        %v2335 = vpop.f32.mrb[0].mxu0
        %2336 = vmatprep.mubr.bf16.mxu0 0
        %2337 = vmatmul.mubr.bf16.gmra.mrb[0].mxu0 %v783
        %v2338 = vpop.f32.mrb[0].mxu0
        %v2339 = vadd.f32 %v2178, %v2338
        %v2340 = vpop.f32.mrb[0].mxu0
        %v2341 = vpop.f32.mrb[0].mxu0
        %v2342 = vadd.f32 %v2181, %v2341
        %v2343 = vpop.f32.mrb[0].mxu0
        %2344 = vmatprep.mubr.bf16.mxu0 0
        %2345 = vmatmul.mubr.bf16.gmra.mrb[0].mxu0 %v786
        %v2346 = vpop.f32.mrb[0].mxu0
        %v2347 = vadd.f32 %v2186, %v2346
        %v2348 = vpop.f32.mrb[0].mxu0
        %v2349 = vpop.f32.mrb[0].mxu0
        %v2350 = vadd.f32 %v2189, %v2349
        %v2351 = vpop.f32.mrb[0].mxu0
        %2352 = vmatprep.mubr.bf16.mxu0 0
        %2353 = vmatmul.mubr.bf16.gmra.mrb[0].mxu0 %v789
        %v2354 = vpop.f32.mrb[0].mxu0
        %v2355 = vadd.f32 %v2194, %v2354
        %v2356 = vpop.f32.mrb[0].mxu0
        %v2357 = vpop.f32.mrb[0].mxu0
        %v2358 = vadd.f32 %v2197, %v2357
        %v2359 = vpop.f32.mrb[0].mxu0
        %2360 = vmatprep.mubr.bf16.mxu0 0
        %2361 = vmatmul.mubr.bf16.gmra.mrb[0].mxu0 %v792
        %v2362 = vpop.f32.mrb[0].mxu0
        %v2363 = vadd.f32 %v2202, %v2362
        %v2364 = vpop.f32.mrb[0].mxu0
        %v2365 = vpop.f32.mrb[0].mxu0
        %v2366 = vadd.f32 %v2205, %v2365
        %v2367 = vpop.f32.mrb[0].mxu0
        %2368 = vmatprep.mubr.bf16.mxu0 0
        %2369 = vmatmul.mubr.bf16.gmra.mrb[0].mxu0 %v795
        %v2370 = vpop.f32.mrb[0].mxu0
        %v2371 = vadd.f32 %v2210, %v2370
        %v2372 = vpop.f32.mrb[0].mxu0
        %v2373 = vpop.f32.mrb[0].mxu0
        %v2374 = vadd.f32 %v2213, %v2373
        %v2375 = vpop.f32.mrb[0].mxu0
        %2376 = vmatprep.mubr.bf16.mxu0 0
        %2377 = vmatmul.mubr.bf16.gmra.mrb[0].mxu0 %v798
        %v2378 = vpop.f32.mrb[0].mxu0
        %v2379 = vadd.f32 %v2218, %v2378
        %v2380 = vpop.f32.mrb[0].mxu0
        %v2381 = vpop.f32.mrb[0].mxu0
        %v2382 = vadd.f32 %v2221, %v2381
        %v2383 = vpop.f32.mrb[0].mxu0
        %2384 = vmatprep.mubr.bf16.mxu0 0
        %2385 = vmatmul.mubr.bf16.gmra.mrb[0].mxu0 %v801
        %v2386 = vpop.f32.mrb[0].mxu0
        %v2387 = vadd.f32 %v2226, %v2386
        %v2388 = vpop.f32.mrb[0].mxu0
        %v2389 = vpop.f32.mrb[0].mxu0
        %v2390 = vadd.f32 %v2229, %v2389
        %v2391 = vpop.f32.mrb[0].mxu0
        %2392 = vmatprep.mubr.bf16.mxu0 0
        %2393 = vmatmul.mubr.bf16.gmra.mrb[0].mxu0 %v804
        %v2394 = vpop.f32.mrb[0].mxu0
        %v2395 = vadd.f32 %v2234, %v2394
        %v2396 = vpop.f32.mrb[0].mxu0
        %v2397 = vpop.f32.mrb[0].mxu0
        %v2398 = vadd.f32 %v2237, %v2397
        %v2399 = vpop.f32.mrb[0].mxu0
        %2400 = vmatprep.mubr.bf16.mxu0 0
        %2401 = vmatmul.mubr.bf16.gmra.mrb[0].mxu0 %v893
        %v2402 = vpop.f32.mrb[0].mxu0
        %v2403 = vadd.f32 %v2242, %v2402
        %v2404 = vpop.f32.mrb[0].mxu0
        %v2405 = vpop.f32.mrb[0].mxu0
        %v2406 = vadd.f32 %v2245, %v2405
        %v2407 = vpop.f32.mrb[0].mxu0
        %2408 = vmatprep.mubr.bf16.mxu0 0
        %2409 = vmatmul.mubr.bf16.gmra.mrb[0].mxu0 %v1900
        %v2410 = vpop.f32.mrb[0].mxu0
        %v2411 = vadd.f32 %v2250, %v2410
        %v2412 = vpop.f32.mrb[0].mxu0
        %v2413 = vpop.f32.mrb[0].mxu0
        %v2414 = vadd.f32 %v2253, %v2413
        %v2415 = vpop.f32.mrb[0].mxu0
        %2416 = vdwg.mxu0
        %v2417 = vadd.f32 %v1750, %v2291
        %v2418 = vadd.f32 %v1753, %v2294
        %v2419 = vadd.f32 %v1758, %v2299
        %v2420 = vadd.f32 %v1761, %v2302
        %v2421 = vadd.f32 %v1766, %v2307
        %v2422 = vadd.f32 %v1769, %v2310
        %v2423 = vadd.f32 %v1774, %v2315
        %v2424 = vadd.f32 %v1777, %v2318
        %v2425 = vadd.f32 %v1782, %v2323
        %v2426 = vadd.f32 %v1785, %v2326
        %v2427 = vadd.f32 %v1790, %v2331
        %v2428 = vadd.f32 %v1793, %v2334
        %v2429 = vadd.f32 %v1798, %v2339
        %v2430 = vadd.f32 %v1801, %v2342
        %v2431 = vadd.f32 %v1806, %v2347
        %v2432 = vadd.f32 %v1809, %v2350
        %v2433 = vadd.f32 %v1814, %v2355
        %v2434 = vadd.f32 %v1817, %v2358
        %v2435 = vadd.f32 %v1822, %v2363
        %v2436 = vadd.f32 %v1825, %v2366
        %v2437 = vadd.f32 %v1830, %v2371
        %v2438 = vadd.f32 %v1833, %v2374
        %v2439 = vadd.f32 %v1838, %v2379
        %v2440 = vadd.f32 %v1841, %v2382
        %v2441 = vadd.f32 %v1846, %v2387
        %v2442 = vadd.f32 %v1849, %v2390
        %v2443 = vadd.f32 %v1854, %v2395
        %v2444 = vadd.f32 %v1857, %v2398
        %v2445 = vadd.f32 %v1862, %v2403
        %v2446 = vadd.f32 %v1865, %v2406
        %v2447 = vadd.f32 %v1870, %v2411
        %v2448 = vadd.f32 %v1873, %v2414
        %v2449 = vld [vmem:[#allocation4] sm:$0x1]
        %v2451 = vlaneseq
        %v2452 = vshrl.u32 %v2451, 7
        %v2453 = vsub.s32 0, %v2452
        %v2454 = vrot.slane %v2449, %v2453
        %v2456 = vadd.f32 %v2417, %v2454
        %v2457 = vadd.f32 %v2418, %v2454
        %v2458 = vadd.f32 %v2419, %v2454
        %v2459 = vadd.f32 %v2420, %v2454
        %v2460 = vadd.f32 %v2421, %v2454
        %v2461 = vadd.f32 %v2422, %v2454
        %v2462 = vadd.f32 %v2423, %v2454
        %v2463 = vadd.f32 %v2424, %v2454
        %v2464 = vadd.f32 %v2425, %v2454
        %v2465 = vadd.f32 %v2426, %v2454
        %v2466 = vadd.f32 %v2427, %v2454
        %v2467 = vadd.f32 %v2428, %v2454
        %v2468 = vadd.f32 %v2429, %v2454
        %v2469 = vadd.f32 %v2430, %v2454
        %v2470 = vadd.f32 %v2431, %v2454
        %v2471 = vadd.f32 %v2432, %v2454
        %v2472 = vadd.f32 %v2433, %v2454
        %v2473 = vadd.f32 %v2434, %v2454
        %v2474 = vadd.f32 %v2435, %v2454
        %v2475 = vadd.f32 %v2436, %v2454
        %v2476 = vadd.f32 %v2437, %v2454
        %v2477 = vadd.f32 %v2438, %v2454
        %v2478 = vadd.f32 %v2439, %v2454
        %v2479 = vadd.f32 %v2440, %v2454
        %v2480 = vadd.f32 %v2441, %v2454
        %v2481 = vadd.f32 %v2442, %v2454
        %v2482 = vadd.f32 %v2443, %v2454
        %v2483 = vadd.f32 %v2444, %v2454
        %v2484 = vadd.f32 %v2445, %v2454
        %v2485 = vadd.f32 %v2446, %v2454
        %v2486 = vadd.f32 %v2447, %v2454
        %v2487 = vadd.f32 %v2448, %v2454
        %2488 = vst [vmem:[%s346] sm:$0xff] %v2456
        %2489 = vst [vmem:[%s346 + $0x8] sm:$0xff] %v2457
        %2490 = vst [vmem:[%s346 + $0x10] sm:$0xff] %v2458
        %2491 = vst [vmem:[%s346 + $0x18] sm:$0xff] %v2459
        %2492 = vst [vmem:[%s346 + $0x20] sm:$0xff] %v2460
        %2493 = vst [vmem:[%s346 + $0x28] sm:$0xff] %v2461
        %2494 = vst [vmem:[%s346 + $0x30] sm:$0xff] %v2462
        %2495 = vst [vmem:[%s346 + $0x38] sm:$0xff] %v2463
        %2496 = vst [vmem:[%s346 + $0x40] sm:$0xff] %v2464
        %2497 = vst [vmem:[%s346 + $0x48] sm:$0xff] %v2465
        %2498 = vst [vmem:[%s346 + $0x50] sm:$0xff] %v2466
        %2499 = vst [vmem:[%s346 + $0x58] sm:$0xff] %v2467
        %2500 = vst [vmem:[%s346 + $0x60] sm:$0xff] %v2468
        %2501 = vst [vmem:[%s346 + $0x68] sm:$0xff] %v2469
        %2502 = vst [vmem:[%s346 + $0x70] sm:$0xff] %v2470
        %2503 = vst [vmem:[%s346 + $0x78] sm:$0xff] %v2471
        %2504 = vst [vmem:[%s346 + $0x80] sm:$0xff] %v2472
        %2505 = vst [vmem:[%s346 + $0x88] sm:$0xff] %v2473
        %2506 = vst [vmem:[%s346 + $0x90] sm:$0xff] %v2474
        %2507 = vst [vmem:[%s346 + $0x98] sm:$0xff] %v2475
        %2508 = vst [vmem:[%s346 + $0xa0] sm:$0xff] %v2476
        %2509 = vst [vmem:[%s346 + $0xa8] sm:$0xff] %v2477
        %2510 = vst [vmem:[%s346 + $0xb0] sm:$0xff] %v2478
        %2511 = vst [vmem:[%s346 + $0xb8] sm:$0xff] %v2479
        %2512 = vst [vmem:[%s346 + $0xc0] sm:$0xff] %v2480
        %2513 = vst [vmem:[%s346 + $0xc8] sm:$0xff] %v2481
        %2514 = vst [vmem:[%s346 + $0xd0] sm:$0xff] %v2482
        %2515 = vst [vmem:[%s346 + $0xd8] sm:$0xff] %v2483
        %2516 = vst [vmem:[%s346 + $0xe0] sm:$0xff] %v2484
        %2517 = vst [vmem:[%s346 + $0xe8] sm:$0xff] %v2485
        %2518 = vst [vmem:[%s346 + $0xf0] sm:$0xff] %v2486
        %2519 = vst [vmem:[%s346 + $0xf8] sm:$0xff] %v2487
        %s2520 = smul.u32 16, %s22
        %p2521 = scmp.lt.s32.totalorder %s21, 5
        %s2522 = scalar_select %p2521, %s21, 5
        %p2523 = scmp.lt.s32.totalorder %s2520, 15
        %s2524 = scalar_select %p2523, %s2520, 15
        %s2525 = smul.addr %s2524, 2
        %s2526 = smul.addr %s2522, 32
        %s2527 = sadd.s32 %s2525, %s2526
        %s2528 = smul.addr %s2527, 8
        %s2529 = scalar_lea.vmem %s4, %s2528
        // Predicated region
        $region45: #{_upsample_forward.1} parent=35 // pred_check
          %p2530 = pneg %p151
        $region46: #{_upsample_forward.1} parent=35 // pred_check_branch
          %2532 = sbr.rel (%p2530) target = $region48
        $region47: #{_upsample_forward.1} parent=35 // pred_region
          %s2533 = smul.u32 16, %s22
        $region48: #{_upsample_forward.1} parent=35 // pred_fallthru
          _
      $region36: #{_upsample_forward.1} parent=5 // pred_fallthru
        _
      %p2534 = scmp.le.s32.totalorder 2, %s12
      // Predicated region
      $region49: #{_upsample_forward.1} parent=5 // pred_check
        %p2535 = pneg %p2534
      $region50: #{_upsample_forward.1} parent=5 // pred_check_branch
        %2537 = sbr.rel (%p2535) target = $region52
      $region51: #{_upsample_forward.1} parent=5 // pred_region
        %s2538 = ssub.s32 %s12, 2
        // Predicated region
        $region53: #{_upsample_forward.1} parent=51 // pred_check
          %p2539 = pneg %p157
        $region54: #{_upsample_forward.1} parent=51 // pred_check_branch
          %2541 = sbr.rel (%p2539) target = $region56
        $region55: #{_upsample_forward.1} parent=51 // pred_region
          %s2542 = smul.u32 16, %s24
          %p2543 = scmp.lt.s32.totalorder %s23, 5
          %s2544 = scalar_select %p2543, %s23, 5
          %p2545 = scmp.lt.s32.totalorder %s2542, 15
          %s2546 = scalar_select %p2545, %s2542, 15
          %s2547 = smul.addr %s2546, 2
          %s2548 = smul.addr %s2544, 32
          %s2549 = sadd.s32 %s2547, %s2548
          %s2550 = smul.addr %s2549, 8
          %s2551 = scalar_lea.vmem %s4, %s2550
        $region56: #{_upsample_forward.1} parent=51 // pred_fallthru
          _
      $region52: #{_upsample_forward.1} parent=5 // pred_fallthru
        _
    $region6: #{_upsample_forward.1} parent=1 // loop_footer
      %s16 = sadd.s32 1, %s12
    $region7: #{_upsample_forward.1} parent=1 // loop_footer_branch
      %11 = sbr.rel target = $region3
    $region8: #{_upsample_forward.1} parent=1 // loop_exit
      _
    %2552 = vsyncpa [#allocation3], 1
    %s2553 = scalar_lea.sflag [#allocation3], 1
    %2554 = vsyncpa %s2553, 1
    %2555 = vsyncpa [#allocation5], 1

</llo_original>
